<compile_context>
chip_gen: v5e
topology: v5e:2x2
jax: 0.10.0
libtpu: 0.0.40
codegen_flags: <defaults>
</compile_context>

<pallas_src>
import numpy as np
import jax
import jax.numpy as jnp
from jax import lax
from jax.experimental import pallas as pl
from jax.experimental.pallas import tpu as pltpu


# ---------------------------------------------------------------------------
# Host-side glue: linear operators for upsample x4 (align_corners) + 3x3 taps.
# ---------------------------------------------------------------------------
def _bilinear_upsample_matrix(out_len, in_len):
    """U[y, :] = bilinear weights, F.interpolate(..., align_corners=True)."""
    U = np.zeros((out_len, in_len), dtype=np.float32)
    if in_len == 1:
        U[:, 0] = 1.0
        return U
    scale = (in_len - 1) / (out_len - 1)
    for y in range(out_len):
        src = y * scale
        i0 = min(int(np.floor(src)), in_len - 1)
        i1 = min(i0 + 1, in_len - 1)
        frac = src - i0
        U[y, i0] += 1.0 - frac
        U[y, i1] += frac
    return U


def _shift_matrix(n, d):
    """(S_d x)[i] = x[i + d] with zero padding (conv tap offset d)."""
    S = np.zeros((n, n), dtype=np.float32)
    for i in range(n):
        j = i + d
        if 0 <= j < n:
            S[i, j] = 1.0
    return S


def _tap_operators(h, w, H, W):
    """B_t^T (h*w, H*W) for the 9 depthwise taps, t = kh*3 + kw (row-major)."""
    U_h = _bilinear_upsample_matrix(H, h)
    U_w = _bilinear_upsample_matrix(W, w)
    mats = []
    for kh in range(3):
        for kw in range(3):
            Ah = _shift_matrix(H, kh - 1) @ U_h      # (H, h)
            Aw = _shift_matrix(W, kw - 1) @ U_w      # (W, w)
            mats.append(np.kron(Ah, Aw).T)           # (h*w, H*W)
    return np.stack(mats).astype(np.float32)         # (9, h*w, H*W)


# ---------------------------------------------------------------------------
# Pallas kernel: one batch element per grid step, fully folded linear algebra.
# ---------------------------------------------------------------------------
def ffm_kernel(xu_ref, xl_ref, wt_ref, bt_ref, wlow_ref, bias_ref, o_ref):
    # xu_ref:   (1, C_up, h*w)   low-res (upper) features, spatial flattened
    # xl_ref:   (1, C_low, H*W)  high-res (lower) features, spatial flattened
    # wt_ref:   (9, OUT, C_up)   per-tap folded channel-mix weights
    # bt_ref:   (9, h*w, H*W)    per-tap spatial operators (upsample+shift)^T
    # wlow_ref: (OUT, C_low)     conv_lower 1x1 weights
    # bias_ref: (OUT, 1)         combined bias (W_up @ b_dw + b_up + b_low)
    # o_ref:    (1, OUT, H*W)
    x_up = xu_ref[0]   # (C_up, h*w)
    x_lo = xl_ref[0]   # (C_low, H*W)
    n_taps = wt_ref.shape[0]

    # lower branch (single lane-dense matmul) + bias as accumulator init
    acc = jnp.dot(wlow_ref[...], x_lo, preferred_element_type=jnp.float32)
    acc = acc + bias_ref[...]                          # (OUT, H*W) + (OUT, 1)

    # upper branch: upsample + depthwise 3x3 + 1x1 conv, folded into
    # 9 (OUT,C)@(C,hw) -> (OUT,hw)@(hw,HW) matmul pairs (static unroll).
    for t in range(n_taps):
        g = jnp.dot(wt_ref[t], x_up, preferred_element_type=jnp.float32)
        acc = acc + jnp.dot(g, bt_ref[t], preferred_element_type=jnp.float32)

    o_ref[0] = acc.astype(o_ref.dtype)


def feature_fusion(upper_x, lower_x, dw_w, dw_b, w_up, b_up, w_low, b_low):
    """Pallas implementation of FeatureFusionModule.forward (NCHW in/out)."""
    N, C_up, h, w = upper_x.shape
    Nl, C_low, H, W = lower_x.shape
    OUT = w_up.shape[0]
    assert Nl == N and H == 4 * h and W == 4 * w
    assert w_up.shape[1] == C_up, "module requires upper_in_channels == out_channels"
    hw, HW = h * w, H * W
    n_taps = 9

    # -------- host precompute (pure glue, tiny) --------
    b_stack = jnp.asarray(_tap_operators(h, w, H, W))            # (9, hw, HW)
    dww_flat = dw_w.reshape(C_up, n_taps)                        # (C_up, 9)
    # fold conv_upper into each depthwise tap:  Wt[t] = W_up * dw_w[:, t]
    wt_stack = w_up[None, :, :] * jnp.transpose(dww_flat)[:, None, :]  # (9,OUT,C_up)
    # fold all biases into one vector
    bias_eff = (w_up @ dw_b + b_up + b_low).reshape(OUT, 1)

    xu_flat = upper_x.reshape(N, C_up, hw)
    xl_flat = lower_x.reshape(N, C_low, HW)

    out_flat = pl.pallas_call(
        ffm_kernel,
        out_shape=jax.ShapeDtypeStruct((N, OUT, HW), jnp.float32),
        grid=(N,),
        in_specs=[
            pl.BlockSpec((1, C_up, hw), lambda n: (n, 0, 0)),
            pl.BlockSpec((1, C_low, HW), lambda n: (n, 0, 0)),
            pl.BlockSpec((n_taps, OUT, C_up), lambda n: (0, 0, 0)),
            pl.BlockSpec((n_taps, hw, HW), lambda n: (0, 0, 0)),
            pl.BlockSpec((OUT, C_low), lambda n: (0, 0)),
            pl.BlockSpec((OUT, 1), lambda n: (0, 0)),
        ],
        out_specs=pl.BlockSpec((1, OUT, HW), lambda n: (n, 0, 0)),
        compiler_params=pltpu.CompilerParams(
            dimension_semantics=("parallel",)),
    )(xu_flat, xl_flat, wt_stack, b_stack, w_low, bias_eff)

    return out_flat.reshape(N, OUT, H, W)


# ---------------------------------------------------------------------------
# Pure-JAX reference matching the PyTorch forward (independent code path).
# ---------------------------------------------------------------------------
def ffm_reference(upper_x, lower_x, dw_w, dw_b, w_up, b_up, w_low, b_low):
    N, C_up, h, w = upper_x.shape
    H, W = 4 * h, 4 * w
    hi = lax.Precision.HIGHEST
    U_h = jnp.asarray(_bilinear_upsample_matrix(H, h))
    U_w = jnp.asarray(_bilinear_upsample_matrix(W, w))
    up = jnp.einsum('Hh,nchw->ncHw', U_h, upper_x, precision=hi)
    up = jnp.einsum('Ww,ncHw->ncHW', U_w, up, precision=hi)
    dw = lax.conv_general_dilated(
        up, dw_w, window_strides=(1, 1), padding=((1, 1), (1, 1)),
        dimension_numbers=('NCHW', 'OIHW', 'NCHW'),
        feature_group_count=C_up, precision=hi)
    dw = dw + dw_b[None, :, None, None]
    upper = jnp.einsum('oc,nchw->nohw', w_up, dw, precision=hi) \
        + b_up[None, :, None, None]
    lower = jnp.einsum('oc,nchw->nohw', w_low, lower_x, precision=hi) \
        + b_low[None, :, None, None]
    return upper + lower


if __name__ == "__main__":
    # Small shapes consistent with the module: conv_upper forces
    # upper_in_channels == out_channels.
    N = 2
    C_UP = OUT = 32          # upper_in_channels == out_channels
    C_LOW = 16               # lower_in_channels
    h, w = 4, 4              # upper (low-res) spatial
    H, W = 4 * h, 4 * w      # lower / output spatial = 16x16  (H*W = 256 lanes)

    key = jax.random.PRNGKey(0)
    ks = jax.random.split(key, 8)
    upper_x = jax.random.normal(ks[0], (N, C_UP, h, w), dtype=jnp.float32)
    lower_x = jax.random.normal(ks[1], (N, C_LOW, H, W), dtype=jnp.float32)
    # synthetic parameters with the module's weight shapes
    dw_w = jax.random.normal(ks[2], (C_UP, 1, 3, 3), dtype=jnp.float32) * 0.2
    dw_b = jax.random.normal(ks[3], (C_UP,), dtype=jnp.float32) * 0.1
    w_up = jax.random.normal(ks[4], (OUT, C_UP), dtype=jnp.float32) * 0.2
    b_up = jax.random.normal(ks[5], (OUT,), dtype=jnp.float32) * 0.1
    w_low = jax.random.normal(ks[6], (OUT, C_LOW), dtype=jnp.float32) * 0.2
    b_low = jax.random.normal(ks[7], (OUT,), dtype=jnp.float32) * 0.1

    out = feature_fusion(upper_x, lower_x, dw_w, dw_b, w_up, b_up, w_low, b_low)
    out = jax.block_until_ready(out)

    ref = ffm_reference(upper_x, lower_x, dw_w, dw_b, w_up, b_up, w_low, b_low)
    assert out.shape == (N, OUT, H, W)
    max_err = float(jnp.max(jnp.abs(out - ref)))
    assert bool(jnp.allclose(out, ref, atol=2e-4, rtol=2e-4)), max_err
    print("KERNEL_OK")
</pallas_src>

<mosaic_0001>
module attributes {stable_mosaic.version = 11 : i64} {
  func.func @ffm_kernel(%arg0: i32, %arg1: memref<1x32x16xf32, #tpu.memory_space<vmem>>, %arg2: memref<1x16x256xf32, #tpu.memory_space<vmem>>, %arg3: memref<9x32x32xf32, #tpu.memory_space<vmem>>, %arg4: memref<9x16x256xf32, #tpu.memory_space<vmem>>, %arg5: memref<32x16xf32, #tpu.memory_space<vmem>>, %arg6: memref<32x1xf32, #tpu.memory_space<vmem>>, %arg7: memref<1x32x256xf32, #tpu.memory_space<vmem>>) attributes {dimension_semantics = [#tpu.dimension_semantics<parallel>], iteration_bounds = array<i64: 2>, scalar_prefetch = 0 : i64, scratch_operands = 0 : i64, tpu.core_type = #tpu.core_type<tc>, window_params = [{transform_indices = @transform_0, window_bounds = array<i64: 1, 32, 16>}, {transform_indices = @transform_1, window_bounds = array<i64: 1, 16, 256>}, {pipeline_mode = #tpu.pipeline_mode<synchronous>, transform_indices = @transform_2, window_bounds = array<i64: 9, 32, 32>}, {pipeline_mode = #tpu.pipeline_mode<synchronous>, transform_indices = @transform_3, window_bounds = array<i64: 9, 16, 256>}, {pipeline_mode = #tpu.pipeline_mode<synchronous>, transform_indices = @transform_4, window_bounds = array<i64: 32, 16>}, {pipeline_mode = #tpu.pipeline_mode<synchronous>, transform_indices = @transform_5, window_bounds = array<i64: 32, 1>}, {transform_indices = @transform_6, window_bounds = array<i64: 1, 32, 256>}]} {
    %c0 = arith.constant 0 : index
    %c0_0 = arith.constant 0 : index
    %c0_1 = arith.constant 0 : index
    %0 = vector.load %arg1[%c0, %c0_0, %c0_1] : memref<1x32x16xf32, #tpu.memory_space<vmem>>, vector<1x32x16xf32>
    %1 = vector.shape_cast %0 : vector<1x32x16xf32> to vector<32x16xf32>
    %c0_2 = arith.constant 0 : index
    %c0_3 = arith.constant 0 : index
    %c0_4 = arith.constant 0 : index
    %2 = vector.load %arg2[%c0_2, %c0_3, %c0_4] : memref<1x16x256xf32, #tpu.memory_space<vmem>>, vector<1x16x256xf32>
    %3 = vector.shape_cast %2 : vector<1x16x256xf32> to vector<16x256xf32>
    %c0_5 = arith.constant 0 : index
    %c0_6 = arith.constant 0 : index
    %4 = vector.load %arg5[%c0_5, %c0_6] : memref<32x16xf32, #tpu.memory_space<vmem>>, vector<32x16xf32>
    %cst = arith.constant dense<0.000000e+00> : vector<32x256xf32>
    %5 = tpu.matmul %4, %3, %cst {dimension_numbers = #tpu.dot_dimension_numbers<[1], [0], [0], [1], [0, 0, 1, 1], [], []>} : vector<32x16xf32>, vector<16x256xf32>, vector<32x256xf32> -> vector<32x256xf32>
    %c0_7 = arith.constant 0 : index
    %c0_8 = arith.constant 0 : index
    %6 = vector.load %arg6[%c0_7, %c0_8] : memref<32x1xf32, #tpu.memory_space<vmem>>, vector<32x1xf32>
    %7 = vector.broadcast %6 : vector<32x1xf32> to vector<32x256xf32>
    %8 = arith.addf %5, %7 : vector<32x256xf32>
    %c0_9 = arith.constant 0 : index
    %c0_10 = arith.constant 0 : index
    %c0_11 = arith.constant 0 : index
    %9 = vector.load %arg3[%c0_9, %c0_10, %c0_11] : memref<9x32x32xf32, #tpu.memory_space<vmem>>, vector<1x32x32xf32>
    %10 = vector.shape_cast %9 : vector<1x32x32xf32> to vector<32x32xf32>
    %cst_12 = arith.constant dense<0.000000e+00> : vector<32x16xf32>
    %11 = tpu.matmul %10, %1, %cst_12 {dimension_numbers = #tpu.dot_dimension_numbers<[1], [0], [0], [1], [0, 0, 1, 1], [], []>} : vector<32x32xf32>, vector<32x16xf32>, vector<32x16xf32> -> vector<32x16xf32>
    %c0_13 = arith.constant 0 : index
    %c0_14 = arith.constant 0 : index
    %c0_15 = arith.constant 0 : index
    %12 = vector.load %arg4[%c0_13, %c0_14, %c0_15] : memref<9x16x256xf32, #tpu.memory_space<vmem>>, vector<1x16x256xf32>
    %13 = vector.shape_cast %12 : vector<1x16x256xf32> to vector<16x256xf32>
    %cst_16 = arith.constant dense<0.000000e+00> : vector<32x256xf32>
    %14 = tpu.matmul %11, %13, %cst_16 {dimension_numbers = #tpu.dot_dimension_numbers<[1], [0], [0], [1], [0, 0, 1, 1], [], []>} : vector<32x16xf32>, vector<16x256xf32>, vector<32x256xf32> -> vector<32x256xf32>
    %15 = arith.addf %8, %14 : vector<32x256xf32>
    %c1 = arith.constant 1 : index
    %c0_17 = arith.constant 0 : index
    %c0_18 = arith.constant 0 : index
    %16 = vector.load %arg3[%c1, %c0_17, %c0_18] : memref<9x32x32xf32, #tpu.memory_space<vmem>>, vector<1x32x32xf32>
    %17 = vector.shape_cast %16 : vector<1x32x32xf32> to vector<32x32xf32>
    %cst_19 = arith.constant dense<0.000000e+00> : vector<32x16xf32>
    %18 = tpu.matmul %17, %1, %cst_19 {dimension_numbers = #tpu.dot_dimension_numbers<[1], [0], [0], [1], [0, 0, 1, 1], [], []>} : vector<32x32xf32>, vector<32x16xf32>, vector<32x16xf32> -> vector<32x16xf32>
    %c1_20 = arith.constant 1 : index
    %c0_21 = arith.constant 0 : index
    %c0_22 = arith.constant 0 : index
    %19 = vector.load %arg4[%c1_20, %c0_21, %c0_22] : memref<9x16x256xf32, #tpu.memory_space<vmem>>, vector<1x16x256xf32>
    %20 = vector.shape_cast %19 : vector<1x16x256xf32> to vector<16x256xf32>
    %cst_23 = arith.constant dense<0.000000e+00> : vector<32x256xf32>
    %21 = tpu.matmul %18, %20, %cst_23 {dimension_numbers = #tpu.dot_dimension_numbers<[1], [0], [0], [1], [0, 0, 1, 1], [], []>} : vector<32x16xf32>, vector<16x256xf32>, vector<32x256xf32> -> vector<32x256xf32>
    %22 = arith.addf %15, %21 : vector<32x256xf32>
    %c2 = arith.constant 2 : index
    %c0_24 = arith.constant 0 : index
    %c0_25 = arith.constant 0 : index
    %23 = vector.load %arg3[%c2, %c0_24, %c0_25] : memref<9x32x32xf32, #tpu.memory_space<vmem>>, vector<1x32x32xf32>
    %24 = vector.shape_cast %23 : vector<1x32x32xf32> to vector<32x32xf32>
    %cst_26 = arith.constant dense<0.000000e+00> : vector<32x16xf32>
    %25 = tpu.matmul %24, %1, %cst_26 {dimension_numbers = #tpu.dot_dimension_numbers<[1], [0], [0], [1], [0, 0, 1, 1], [], []>} : vector<32x32xf32>, vector<32x16xf32>, vector<32x16xf32> -> vector<32x16xf32>
    %c2_27 = arith.constant 2 : index
    %c0_28 = arith.constant 0 : index
    %c0_29 = arith.constant 0 : index
    %26 = vector.load %arg4[%c2_27, %c0_28, %c0_29] : memref<9x16x256xf32, #tpu.memory_space<vmem>>, vector<1x16x256xf32>
    %27 = vector.shape_cast %26 : vector<1x16x256xf32> to vector<16x256xf32>
    %cst_30 = arith.constant dense<0.000000e+00> : vector<32x256xf32>
    %28 = tpu.matmul %25, %27, %cst_30 {dimension_numbers = #tpu.dot_dimension_numbers<[1], [0], [0], [1], [0, 0, 1, 1], [], []>} : vector<32x16xf32>, vector<16x256xf32>, vector<32x256xf32> -> vector<32x256xf32>
    %29 = arith.addf %22, %28 : vector<32x256xf32>
    %c3 = arith.constant 3 : index
    %c0_31 = arith.constant 0 : index
    %c0_32 = arith.constant 0 : index
    %30 = vector.load %arg3[%c3, %c0_31, %c0_32] : memref<9x32x32xf32, #tpu.memory_space<vmem>>, vector<1x32x32xf32>
    %31 = vector.shape_cast %30 : vector<1x32x32xf32> to vector<32x32xf32>
    %cst_33 = arith.constant dense<0.000000e+00> : vector<32x16xf32>
    %32 = tpu.matmul %31, %1, %cst_33 {dimension_numbers = #tpu.dot_dimension_numbers<[1], [0], [0], [1], [0, 0, 1, 1], [], []>} : vector<32x32xf32>, vector<32x16xf32>, vector<32x16xf32> -> vector<32x16xf32>
    %c3_34 = arith.constant 3 : index
    %c0_35 = arith.constant 0 : index
    %c0_36 = arith.constant 0 : index
    %33 = vector.load %arg4[%c3_34, %c0_35, %c0_36] : memref<9x16x256xf32, #tpu.memory_space<vmem>>, vector<1x16x256xf32>
    %34 = vector.shape_cast %33 : vector<1x16x256xf32> to vector<16x256xf32>
    %cst_37 = arith.constant dense<0.000000e+00> : vector<32x256xf32>
    %35 = tpu.matmul %32, %34, %cst_37 {dimension_numbers = #tpu.dot_dimension_numbers<[1], [0], [0], [1], [0, 0, 1, 1], [], []>} : vector<32x16xf32>, vector<16x256xf32>, vector<32x256xf32> -> vector<32x256xf32>
    %36 = arith.addf %29, %35 : vector<32x256xf32>
    %c4 = arith.constant 4 : index
    %c0_38 = arith.constant 0 : index
    %c0_39 = arith.constant 0 : index
    %37 = vector.load %arg3[%c4, %c0_38, %c0_39] : memref<9x32x32xf32, #tpu.memory_space<vmem>>, vector<1x32x32xf32>
    %38 = vector.shape_cast %37 : vector<1x32x32xf32> to vector<32x32xf32>
    %cst_40 = arith.constant dense<0.000000e+00> : vector<32x16xf32>
    %39 = tpu.matmul %38, %1, %cst_40 {dimension_numbers = #tpu.dot_dimension_numbers<[1], [0], [0], [1], [0, 0, 1, 1], [], []>} : vector<32x32xf32>, vector<32x16xf32>, vector<32x16xf32> -> vector<32x16xf32>
    %c4_41 = arith.constant 4 : index
    %c0_42 = arith.constant 0 : index
    %c0_43 = arith.constant 0 : index
    %40 = vector.load %arg4[%c4_41, %c0_42, %c0_43] : memref<9x16x256xf32, #tpu.memory_space<vmem>>, vector<1x16x256xf32>
    %41 = vector.shape_cast %40 : vector<1x16x256xf32> to vector<16x256xf32>
    %cst_44 = arith.constant dense<0.000000e+00> : vector<32x256xf32>
    %42 = tpu.matmul %39, %41, %cst_44 {dimension_numbers = #tpu.dot_dimension_numbers<[1], [0], [0], [1], [0, 0, 1, 1], [], []>} : vector<32x16xf32>, vector<16x256xf32>, vector<32x256xf32> -> vector<32x256xf32>
    %43 = arith.addf %36, %42 : vector<32x256xf32>
    %c5 = arith.constant 5 : index
    %c0_45 = arith.constant 0 : index
    %c0_46 = arith.constant 0 : index
    %44 = vector.load %arg3[%c5, %c0_45, %c0_46] : memref<9x32x32xf32, #tpu.memory_space<vmem>>, vector<1x32x32xf32>
    %45 = vector.shape_cast %44 : vector<1x32x32xf32> to vector<32x32xf32>
    %cst_47 = arith.constant dense<0.000000e+00> : vector<32x16xf32>
    %46 = tpu.matmul %45, %1, %cst_47 {dimension_numbers = #tpu.dot_dimension_numbers<[1], [0], [0], [1], [0, 0, 1, 1], [], []>} : vector<32x32xf32>, vector<32x16xf32>, vector<32x16xf32> -> vector<32x16xf32>
    %c5_48 = arith.constant 5 : index
    %c0_49 = arith.constant 0 : index
    %c0_50 = arith.constant 0 : index
    %47 = vector.load %arg4[%c5_48, %c0_49, %c0_50] : memref<9x16x256xf32, #tpu.memory_space<vmem>>, vector<1x16x256xf32>
    %48 = vector.shape_cast %47 : vector<1x16x256xf32> to vector<16x256xf32>
    %cst_51 = arith.constant dense<0.000000e+00> : vector<32x256xf32>
    %49 = tpu.matmul %46, %48, %cst_51 {dimension_numbers = #tpu.dot_dimension_numbers<[1], [0], [0], [1], [0, 0, 1, 1], [], []>} : vector<32x16xf32>, vector<16x256xf32>, vector<32x256xf32> -> vector<32x256xf32>
    %50 = arith.addf %43, %49 : vector<32x256xf32>
    %c6 = arith.constant 6 : index
    %c0_52 = arith.constant 0 : index
    %c0_53 = arith.constant 0 : index
    %51 = vector.load %arg3[%c6, %c0_52, %c0_53] : memref<9x32x32xf32, #tpu.memory_space<vmem>>, vector<1x32x32xf32>
    %52 = vector.shape_cast %51 : vector<1x32x32xf32> to vector<32x32xf32>
    %cst_54 = arith.constant dense<0.000000e+00> : vector<32x16xf32>
    %53 = tpu.matmul %52, %1, %cst_54 {dimension_numbers = #tpu.dot_dimension_numbers<[1], [0], [0], [1], [0, 0, 1, 1], [], []>} : vector<32x32xf32>, vector<32x16xf32>, vector<32x16xf32> -> vector<32x16xf32>
    %c6_55 = arith.constant 6 : index
    %c0_56 = arith.constant 0 : index
    %c0_57 = arith.constant 0 : index
    %54 = vector.load %arg4[%c6_55, %c0_56, %c0_57] : memref<9x16x256xf32, #tpu.memory_space<vmem>>, vector<1x16x256xf32>
    %55 = vector.shape_cast %54 : vector<1x16x256xf32> to vector<16x256xf32>
    %cst_58 = arith.constant dense<0.000000e+00> : vector<32x256xf32>
    %56 = tpu.matmul %53, %55, %cst_58 {dimension_numbers = #tpu.dot_dimension_numbers<[1], [0], [0], [1], [0, 0, 1, 1], [], []>} : vector<32x16xf32>, vector<16x256xf32>, vector<32x256xf32> -> vector<32x256xf32>
    %57 = arith.addf %50, %56 : vector<32x256xf32>
    %c7 = arith.constant 7 : index
    %c0_59 = arith.constant 0 : index
    %c0_60 = arith.constant 0 : index
    %58 = vector.load %arg3[%c7, %c0_59, %c0_60] : memref<9x32x32xf32, #tpu.memory_space<vmem>>, vector<1x32x32xf32>
    %59 = vector.shape_cast %58 : vector<1x32x32xf32> to vector<32x32xf32>
    %cst_61 = arith.constant dense<0.000000e+00> : vector<32x16xf32>
    %60 = tpu.matmul %59, %1, %cst_61 {dimension_numbers = #tpu.dot_dimension_numbers<[1], [0], [0], [1], [0, 0, 1, 1], [], []>} : vector<32x32xf32>, vector<32x16xf32>, vector<32x16xf32> -> vector<32x16xf32>
    %c7_62 = arith.constant 7 : index
    %c0_63 = arith.constant 0 : index
    %c0_64 = arith.constant 0 : index
    %61 = vector.load %arg4[%c7_62, %c0_63, %c0_64] : memref<9x16x256xf32, #tpu.memory_space<vmem>>, vector<1x16x256xf32>
    %62 = vector.shape_cast %61 : vector<1x16x256xf32> to vector<16x256xf32>
    %cst_65 = arith.constant dense<0.000000e+00> : vector<32x256xf32>
    %63 = tpu.matmul %60, %62, %cst_65 {dimension_numbers = #tpu.dot_dimension_numbers<[1], [0], [0], [1], [0, 0, 1, 1], [], []>} : vector<32x16xf32>, vector<16x256xf32>, vector<32x256xf32> -> vector<32x256xf32>
    %64 = arith.addf %57, %63 : vector<32x256xf32>
    %c8 = arith.constant 8 : index
    %c0_66 = arith.constant 0 : index
    %c0_67 = arith.constant 0 : index
    %65 = vector.load %arg3[%c8, %c0_66, %c0_67] : memref<9x32x32xf32, #tpu.memory_space<vmem>>, vector<1x32x32xf32>
    %66 = vector.shape_cast %65 : vector<1x32x32xf32> to vector<32x32xf32>
    %cst_68 = arith.constant dense<0.000000e+00> : vector<32x16xf32>
    %67 = tpu.matmul %66, %1, %cst_68 {dimension_numbers = #tpu.dot_dimension_numbers<[1], [0], [0], [1], [0, 0, 1, 1], [], []>} : vector<32x32xf32>, vector<32x16xf32>, vector<32x16xf32> -> vector<32x16xf32>
    %c8_69 = arith.constant 8 : index
    %c0_70 = arith.constant 0 : index
    %c0_71 = arith.constant 0 : index
    %68 = vector.load %arg4[%c8_69, %c0_70, %c0_71] : memref<9x16x256xf32, #tpu.memory_space<vmem>>, vector<1x16x256xf32>
    %69 = vector.shape_cast %68 : vector<1x16x256xf32> to vector<16x256xf32>
    %cst_72 = arith.constant dense<0.000000e+00> : vector<32x256xf32>
    %70 = tpu.matmul %67, %69, %cst_72 {dimension_numbers = #tpu.dot_dimension_numbers<[1], [0], [0], [1], [0, 0, 1, 1], [], []>} : vector<32x16xf32>, vector<16x256xf32>, vector<32x256xf32> -> vector<32x256xf32>
    %71 = arith.addf %64, %70 : vector<32x256xf32>
    %c0_73 = arith.constant 0 : index
    %c0_74 = arith.constant 0 : index
    %c0_75 = arith.constant 0 : index
    %72 = vector.load %arg7[%c0_73, %c0_74, %c0_75] : memref<1x32x256xf32, #tpu.memory_space<vmem>>, vector<1x32x256xf32>
    %73 = vector.shape_cast %72 : vector<1x32x256xf32> to vector<32x256xf32>
    %74 = vector.shape_cast %71 : vector<32x256xf32> to vector<1x32x256xf32>
    tpu.vector_store %arg7[%c0_73, %c0_74, %c0_75], %74 {strides = array<i32>} : memref<1x32x256xf32, #tpu.memory_space<vmem>>, vector<1x32x256xf32>,
    return
  }
  func.func @transform_0(%arg0: i32) -> (i32, i32, i32) {
    %c0_i32 = arith.constant 0 : i32
    %c0_i32_0 = arith.constant 0 : i32
    %c0_i32_1 = arith.constant 0 : i32
    return %arg0, %c0_i32, %c0_i32_0 : i32, i32, i32
  }
  func.func @transform_1(%arg0: i32) -> (i32, i32, i32) {
    %c0_i32 = arith.constant 0 : i32
    %c0_i32_0 = arith.constant 0 : i32
    %c0_i32_1 = arith.constant 0 : i32
    return %arg0, %c0_i32, %c0_i32_0 : i32, i32, i32
  }
  func.func @transform_2(%arg0: i32) -> (i32, i32, i32) {
    %c0_i32 = arith.constant 0 : i32
    %c0_i32_0 = arith.constant 0 : i32
    %c0_i32_1 = arith.constant 0 : i32
    %c0_i32_2 = arith.constant 0 : i32
    return %c0_i32, %c0_i32_0, %c0_i32_1 : i32, i32, i32
  }
  func.func @transform_3(%arg0: i32) -> (i32, i32, i32) {
    %c0_i32 = arith.constant 0 : i32
    %c0_i32_0 = arith.constant 0 : i32
    %c0_i32_1 = arith.constant 0 : i32
    %c0_i32_2 = arith.constant 0 : i32
    return %c0_i32, %c0_i32_0, %c0_i32_1 : i32, i32, i32
  }
  func.func @transform_4(%arg0: i32) -> (i32, i32) {
    %c0_i32 = arith.constant 0 : i32
    %c0_i32_0 = arith.constant 0 : i32
    %c0_i32_1 = arith.constant 0 : i32
    return %c0_i32, %c0_i32_0 : i32, i32
  }
  func.func @transform_5(%arg0: i32) -> (i32, i32) {
    %c0_i32 = arith.constant 0 : i32
    %c0_i32_0 = arith.constant 0 : i32
    %c0_i32_1 = arith.constant 0 : i32
    return %c0_i32, %c0_i32_0 : i32, i32
  }
  func.func @transform_6(%arg0: i32) -> (i32, i32, i32) {
    %c0_i32 = arith.constant 0 : i32
    %c0_i32_0 = arith.constant 0 : i32
    %c0_i32_1 = arith.constant 0 : i32
    return %arg0, %c0_i32, %c0_i32_0 : i32, i32, i32
  }
}

</mosaic_0001>

<llo_original>
// kernel: tpu_custom_call.1
$region0: #{tpu_custom_call.1}
  #allocation0 [shape = 'u32[]', space=smem, size = 0x4, offset = 0x4, fixed_abs, tag = 'smem constant byte address 0x4 - core index']
  #allocation1 [shape = 'u32[72,128]{1,0:T(1,128)}', space=vmem, size = 0x9000, scoped, tag = 'internal scratch']
  %s0 = inlined_call_operand.vmem [shape: f32[2,32,16], index: 0, kind: input, shape index: {}]
  %s1 = inlined_call_operand.vmem [shape: f32[2,16,256], index: 1, kind: input, shape index: {}]
  %s2 = inlined_call_operand.hbm [shape: f32[9,32,32], index: 2, kind: input, shape index: {}]
  %s3 = inlined_call_operand.hbm [shape: f32[9,16,256], index: 3, kind: input, shape index: {}]
  %s4 = inlined_call_operand.vmem [shape: f32[32,16], index: 4, kind: input, shape index: {}]
  %s5 = inlined_call_operand.vmem [shape: f32[32,1], index: 5, kind: input, shape index: {}]
  %s6 = inlined_call_operand.hbm [shape: f32[2,32,256], index: 6, kind: output, shape index: {}]
  %s7 = sld [smem:[#allocation0]]
  $region65: #{tpu_custom_call.1} parent=0
    _
  %s9 = ssub.s32 1, %s7
  %s10 = scalar_select 0, %s9, %s7
  $region1: #{tpu_custom_call.1} parent=0
    #allocation2 [shape = 'u8[147456]{0}', space=vmem, size = 0x24000, scoped, tag = 'input window, operand 2, single buffered']
    #allocation3 [shape = 's32[2]{0}', space=sflag, size = 0x8, scoped, tag = 'scoped memory for tpu_custom_call.1']
    #allocation4 [shape = 's32[2]{0}', space=sflag, size = 0x8, scoped, tag = 'scoped memory for tpu_custom_call.1']
    #allocation5 [shape = 'u8[147456]{0}', space=vmem, size = 0x24000, scoped, tag = 'input window, operand 3, single buffered']
    #allocation6 [shape = 's32[1]{0}', space=sflag, size = 0x4, scoped, tag = 'scoped memory for tpu_custom_call.1']
    #allocation7 [shape = 'u8[65536]{0}', space=vmem, size = 0x10000, scoped, tag = 'output window, operand 0']
    %11 = vsyncpa [#allocation3], 0
    %12 = vsyncpa [#allocation6], 0
    %13 = vsyncpa [#allocation4], 0
    %s14 = scalar_lea.sflag [#allocation4], 1
    %15 = vsyncpa %s14, 0
    loop: start=0, step=1, limit=4
    $region2: #{tpu_custom_call.1} parent=1 // loop_pre_header
      _
    $region3: #{tpu_custom_call.1} parent=1 // loop_header
      %s17 = sphi 0, %s21
      %p18 = scmp.ge.s32.totalorder %s17, 4
      %s27 = sphi 0, %s29
      %s30 = sphi 0, %s27
      %s31 = sphi 0, %s30
      %s47 = sphi 0, %s31
      %s53 = sphi 0, %s55
      %s56 = sphi 0, %s53
      %s57 = sphi 0, %s56
      %s73 = sphi 0, %s57
      %s77 = sphi 0, %s77
      %s79 = sphi 0, %s77
      %s80 = sphi 0, %s79
      %s94 = sphi 0, %s80
      %s98 = sphi 0, %s98
      %s100 = sphi 0, %s98
      %s101 = sphi 0, %s100
      %s115 = sphi 0, %s101
      %s119 = sphi 0, %s119
      %s121 = sphi 0, %s119
      %s122 = sphi 0, %s121
      %s136 = sphi 0, %s122
      %s140 = sphi 0, %s140
      %s142 = sphi 0, %s140
      %s143 = sphi 0, %s142
      %s157 = sphi 0, %s143
      %s163 = sphi 0, %s165
      %s166 = sphi 0, %s163
      %s167 = sphi 0, %s166
      %s183 = sphi 0, %s167
    $region4: #{tpu_custom_call.1} parent=1 // loop_header_branch
      %20 = sbr.rel (%p18) target = $region8
    $region5: #{tpu_custom_call.1} parent=1 // loop_body
      %s22 = ssub.s32 %s17, 1
      %s23 = ssub.s32 %s17, 2
      %s24 = sadd.s32 %s17, 1
      %s25 = ssub.s32 %s17, %s24
      %p26 = scmp.eq.s32.totalorder %s25, 0
      %s28 = sadd.s32 %s27, 1
      %s29 = scalar_select %p26, %s27, %s28
      %p32 = pneg %p26
      %p33 = scmp.eq.s32.totalorder %s17, 1
      %p34 = por %p32, %p33
      %p35 = scmp.ne.s32.totalorder %s27, %s30
      %p36 = scmp.eq.s32.totalorder %s17, 0
      %p37 = por %p35, %p36
      %p38 = scmp.ne.s32.totalorder %s27, %s30
      %p39 = scmp.eq.s32.totalorder %s22, 1
      %p40 = por %p38, %p39
      %p41 = scmp.ne.s32.totalorder %s30, %s31
      %p42 = scmp.eq.s32.totalorder %s22, 0
      %p43 = por %p41, %p42
      %p44 = scmp.ne.s32.totalorder %s30, %s31
      %p45 = scmp.eq.s32.totalorder %s23, 1
      %p46 = por %p44, %p45
      %p48 = scmp.ne.s32.totalorder %s31, %s47
      %p49 = scmp.eq.s32.totalorder %s23, 0
      %p50 = por %p48, %p49
      %s51 = ssub.s32 %s17, %s24
      %p52 = scmp.eq.s32.totalorder %s51, 0
      %s54 = sadd.s32 %s53, 1
      %s55 = scalar_select %p52, %s53, %s54
      %p58 = pneg %p52
      %p59 = scmp.eq.s32.totalorder %s17, 1
      %p60 = por %p58, %p59
      %p61 = scmp.ne.s32.totalorder %s53, %s56
      %p62 = scmp.eq.s32.totalorder %s17, 0
      %p63 = por %p61, %p62
      %p64 = scmp.ne.s32.totalorder %s53, %s56
      %p65 = scmp.eq.s32.totalorder %s22, 1
      %p66 = por %p64, %p65
      %p67 = scmp.ne.s32.totalorder %s56, %s57
      %p68 = scmp.eq.s32.totalorder %s22, 0
      %p69 = por %p67, %p68
      %p70 = scmp.ne.s32.totalorder %s56, %s57
      %p71 = scmp.eq.s32.totalorder %s23, 1
      %p72 = por %p70, %p71
      %p74 = scmp.ne.s32.totalorder %s57, %s73
      %p75 = scmp.eq.s32.totalorder %s23, 0
      %p76 = por %p74, %p75
      %s78 = sadd.s32 %s77, 1
      %p81 = scmp.eq.s32.totalorder %s17, 1
      %p82 = scmp.ne.s32.totalorder %s77, %s79
      %p83 = scmp.eq.s32.totalorder %s17, 0
      %p84 = por %p82, %p83
      %p85 = scmp.ne.s32.totalorder %s77, %s79
      %p86 = scmp.eq.s32.totalorder %s22, 1
      %p87 = por %p85, %p86
      %p88 = scmp.ne.s32.totalorder %s79, %s80
      %p89 = scmp.eq.s32.totalorder %s22, 0
      %p90 = por %p88, %p89
      %p91 = scmp.ne.s32.totalorder %s79, %s80
      %p92 = scmp.eq.s32.totalorder %s23, 1
      %p93 = por %p91, %p92
      %p95 = scmp.ne.s32.totalorder %s80, %s94
      %p96 = scmp.eq.s32.totalorder %s23, 0
      %p97 = por %p95, %p96
      %s99 = sadd.s32 %s98, 1
      %p102 = scmp.eq.s32.totalorder %s17, 1
      %p103 = scmp.ne.s32.totalorder %s98, %s100
      %p104 = scmp.eq.s32.totalorder %s17, 0
      %p105 = por %p103, %p104
      %p106 = scmp.ne.s32.totalorder %s98, %s100
      %p107 = scmp.eq.s32.totalorder %s22, 1
      %p108 = por %p106, %p107
      %p109 = scmp.ne.s32.totalorder %s100, %s101
      %p110 = scmp.eq.s32.totalorder %s22, 0
      %p111 = por %p109, %p110
      %p112 = scmp.ne.s32.totalorder %s100, %s101
      %p113 = scmp.eq.s32.totalorder %s23, 1
      %p114 = por %p112, %p113
      %p116 = scmp.ne.s32.totalorder %s101, %s115
      %p117 = scmp.eq.s32.totalorder %s23, 0
      %p118 = por %p116, %p117
      %s120 = sadd.s32 %s119, 1
      %p123 = scmp.eq.s32.totalorder %s17, 1
      %p124 = scmp.ne.s32.totalorder %s119, %s121
      %p125 = scmp.eq.s32.totalorder %s17, 0
      %p126 = por %p124, %p125
      %p127 = scmp.ne.s32.totalorder %s119, %s121
      %p128 = scmp.eq.s32.totalorder %s22, 1
      %p129 = por %p127, %p128
      %p130 = scmp.ne.s32.totalorder %s121, %s122
      %p131 = scmp.eq.s32.totalorder %s22, 0
      %p132 = por %p130, %p131
      %p133 = scmp.ne.s32.totalorder %s121, %s122
      %p134 = scmp.eq.s32.totalorder %s23, 1
      %p135 = por %p133, %p134
      %p137 = scmp.ne.s32.totalorder %s122, %s136
      %p138 = scmp.eq.s32.totalorder %s23, 0
      %p139 = por %p137, %p138
      %s141 = sadd.s32 %s140, 1
      %p144 = scmp.eq.s32.totalorder %s17, 1
      %p145 = scmp.ne.s32.totalorder %s140, %s142
      %p146 = scmp.eq.s32.totalorder %s17, 0
      %p147 = por %p145, %p146
      %p148 = scmp.ne.s32.totalorder %s140, %s142
      %p149 = scmp.eq.s32.totalorder %s22, 1
      %p150 = por %p148, %p149
      %p151 = scmp.ne.s32.totalorder %s142, %s143
      %p152 = scmp.eq.s32.totalorder %s22, 0
      %p153 = por %p151, %p152
      %p154 = scmp.ne.s32.totalorder %s142, %s143
      %p155 = scmp.eq.s32.totalorder %s23, 1
      %p156 = por %p154, %p155
      %p158 = scmp.ne.s32.totalorder %s143, %s157
      %p159 = scmp.eq.s32.totalorder %s23, 0
      %p160 = por %p158, %p159
      %s161 = ssub.s32 %s17, %s24
      %p162 = scmp.eq.s32.totalorder %s161, 0
      %s164 = sadd.s32 %s163, 1
      %s165 = scalar_select %p162, %s163, %s164
      %p168 = pneg %p162
      %p169 = scmp.eq.s32.totalorder %s17, 1
      %p170 = por %p168, %p169
      %p171 = scmp.ne.s32.totalorder %s163, %s166
      %p172 = scmp.eq.s32.totalorder %s17, 0
      %p173 = por %p171, %p172
      %p174 = scmp.ne.s32.totalorder %s163, %s166
      %p175 = scmp.eq.s32.totalorder %s22, 1
      %p176 = por %p174, %p175
      %p177 = scmp.ne.s32.totalorder %s166, %s167
      %p178 = scmp.eq.s32.totalorder %s22, 0
      %p179 = por %p177, %p178
      %p180 = scmp.ne.s32.totalorder %s166, %s167
      %p181 = scmp.eq.s32.totalorder %s23, 1
      %p182 = por %p180, %p181
      %p184 = scmp.ne.s32.totalorder %s167, %s183
      %p185 = scmp.eq.s32.totalorder %s23, 0
      %p186 = por %p184, %p185
      %p187 = scmp.le.s32.totalorder 1, %s17
      %p188 = scmp.lt.s32.totalorder %s17, 3
      %p189 = pnand %p187, %p188
      %p190 = pneg %p189
      // Predicated region
      $region9: #{tpu_custom_call.1} parent=5 // pred_check
        _
      $region10: #{tpu_custom_call.1} parent=5 // pred_check_branch
        %192 = sbr.rel (%p189) target = $region12
      $region11: #{tpu_custom_call.1} parent=5 // pred_region
        %s193 = ssub.s32 %s17, 1
        // Predicated region
        $region13: #{tpu_custom_call.1} parent=11 // pred_check
          %p194 = pneg %p90
        $region14: #{tpu_custom_call.1} parent=11 // pred_check_branch
          %196 = sbr.rel (%p194) target = $region16
        $region15: #{tpu_custom_call.1} parent=11 // pred_region
          %198 = vsyncadd [#allocation3], 0
          %s199 = sshll.u32 %s2, 4
          %s200 = int_to_ptr.hbm [resolvable:$true] %s199
          %s201 = sshll.u32 [#allocation2], 4
          %s202 = int_to_ptr.vmem [resolvable:$true] %s201
          %207 = dma.hbm_to_vmem [thread:$0]  %s200, 4608, %s202, [#allocation3], 128, 128, 8
        $region16: #{tpu_custom_call.1} parent=11 // pred_fallthru
          _
        // Predicated region
        $region17: #{tpu_custom_call.1} parent=11 // pred_check
          %p208 = pneg %p111
        $region18: #{tpu_custom_call.1} parent=11 // pred_check_branch
          %210 = sbr.rel (%p208) target = $region20
        $region19: #{tpu_custom_call.1} parent=11 // pred_region
          %212 = vsyncadd [#allocation6], 0
          %s213 = sshll.u32 %s3, 4
          %s214 = int_to_ptr.hbm [resolvable:$true] %s213
          %s215 = sshll.u32 [#allocation5], 4
          %s216 = int_to_ptr.vmem [resolvable:$true] %s215
          %221 = dma.hbm_to_vmem [thread:$0]  %s214, 4608, %s216, [#allocation6], 256, 256, 16
        $region20: #{tpu_custom_call.1} parent=11 // pred_fallthru
          _
        // Predicated region
        $region21: #{tpu_custom_call.1} parent=11 // pred_check
          %p222 = pneg %p132
        $region22: #{tpu_custom_call.1} parent=11 // pred_check_branch
          %224 = sbr.rel (%p222) target = $region24
        $region23: #{tpu_custom_call.1} parent=11 // pred_region
          _
        $region24: #{tpu_custom_call.1} parent=11 // pred_fallthru
          _
        // Predicated region
        $region25: #{tpu_custom_call.1} parent=11 // pred_check
          %p225 = pneg %p153
        $region26: #{tpu_custom_call.1} parent=11 // pred_check_branch
          %227 = sbr.rel (%p225) target = $region28
        $region27: #{tpu_custom_call.1} parent=11 // pred_region
          _
        $region28: #{tpu_custom_call.1} parent=11 // pred_fallthru
          _
      $region12: #{tpu_custom_call.1} parent=5 // pred_fallthru
        _
      %p228 = scmp.lt.s32.totalorder %s17, 2
      // Predicated region
      $region29: #{tpu_custom_call.1} parent=5 // pred_check
        %p229 = pneg %p228
      $region30: #{tpu_custom_call.1} parent=5 // pred_check_branch
        %231 = sbr.rel (%p229) target = $region32
      $region31: #{tpu_custom_call.1} parent=5 // pred_region
        // Predicated region
        $region33: #{tpu_custom_call.1} parent=31 // pred_check
          %p232 = pneg %p37
        $region34: #{tpu_custom_call.1} parent=31 // pred_check_branch
          %234 = sbr.rel (%p232) target = $region36
        $region35: #{tpu_custom_call.1} parent=31 // pred_region
          %p235 = scmp.lt.s32.totalorder %s17, 1
          %s236 = scalar_select %p235, %s17, 1
          %s237 = smul.addr %s236, 4
          %s238 = smul.addr %s237, 8
          %s239 = scalar_lea.vmem %s0, %s238
        $region36: #{tpu_custom_call.1} parent=31 // pred_fallthru
          _
        // Predicated region
        $region37: #{tpu_custom_call.1} parent=31 // pred_check
          %p240 = pneg %p63
        $region38: #{tpu_custom_call.1} parent=31 // pred_check_branch
          %242 = sbr.rel (%p240) target = $region40
        $region39: #{tpu_custom_call.1} parent=31 // pred_region
          %p243 = scmp.lt.s32.totalorder %s17, 1
          %s244 = scalar_select %p243, %s17, 1
          %s245 = smul.addr %s244, 4
          %s246 = smul.addr %s245, 8
          %s247 = scalar_lea.vmem %s1, %s246
        $region40: #{tpu_custom_call.1} parent=31 // pred_fallthru
          _
      $region32: #{tpu_custom_call.1} parent=5 // pred_fallthru
        _
      %p248 = scmp.le.s32.totalorder 1, %s17
      %p249 = scmp.lt.s32.totalorder %s17, 3
      %p250 = pnand %p248, %p249
      %p251 = pneg %p250
      // Predicated region
      $region41: #{tpu_custom_call.1} parent=5 // pred_check
        _
      $region42: #{tpu_custom_call.1} parent=5 // pred_check_branch
        %253 = sbr.rel (%p250) target = $region44
      $region43: #{tpu_custom_call.1} parent=5 // pred_region
        %s254 = ssub.s32 %s17, 1
        // Predicated region
        $region45: #{tpu_custom_call.1} parent=43 // pred_check
          %p255 = pneg %p90
        $region46: #{tpu_custom_call.1} parent=43 // pred_check_branch
          %257 = sbr.rel (%p255) target = $region48
        $region47: #{tpu_custom_call.1} parent=43 // pred_region
          %259 = dma.done [#allocation3], 4608
        $region48: #{tpu_custom_call.1} parent=43 // pred_fallthru
          _
        // Predicated region
        $region49: #{tpu_custom_call.1} parent=43 // pred_check
          %p260 = pneg %p111
        $region50: #{tpu_custom_call.1} parent=43 // pred_check_branch
          %262 = sbr.rel (%p260) target = $region52
        $region51: #{tpu_custom_call.1} parent=43 // pred_region
          %264 = dma.done [#allocation6], 4608
        $region52: #{tpu_custom_call.1} parent=43 // pred_fallthru
          _
        %p265 = scmp.lt.s32.totalorder %s22, 1
        %s266 = scalar_select %p265, %s22, 1
        %s267 = smul.addr %s266, 4
        %s268 = smul.addr %s267, 8
        %s269 = scalar_lea.vmem %s0, %s268
        %p270 = pneg %p43
        %p271 = pneg %p40
        %p272 = scmp.lt.s32.totalorder %s22, 1
        %s273 = scalar_select %p272, %s22, 1
        %s274 = smul.addr %s273, 4
        %s275 = smul.addr %s274, 8
        %s276 = scalar_lea.vmem %s1, %s275
        %p277 = pneg %p69
        %p278 = pneg %p66
        %p279 = pneg %p90
        %p280 = pneg %p87
        %p281 = pneg %p111
        %p282 = pneg %p108
        %p283 = pneg %p132
        %p284 = pneg %p129
        %p285 = pneg %p153
        %p286 = pneg %p150
        %p287 = pneg %p179
        %p288 = pneg %p176
        %s289 = sand.u32 %s166, 1
        %s290 = scalar_lea.sflag [#allocation4], %s289
        %s291 = sand.u32 %s166, 1
        %s292 = smul.addr %s291, 64
        %s293 = scalar_lea.vmem [#allocation7], %s292
        %p294 = scmp.lt.s32.totalorder %s22, 1
        %s295 = scalar_select %p294, %s22, 1
        %s296 = smul.addr %s295, 4
        %s297 = smul.addr %s296, 8
        %s298 = scalar_lea.vmem %s0, %s297
        %p299 = scmp.lt.s32.totalorder %s22, 1
        %s300 = scalar_select %p299, %s22, 1
        %s301 = smul.addr %s300, 4
        %s302 = smul.addr %s301, 8
        %s303 = scalar_lea.vmem %s1, %s302
        %v304 = vld [vmem:[%s298] sm:$0xff]
        %v305 = vld [vmem:[%s298 + $0x8] sm:$0xff]
        %v306 = vld [vmem:[%s298 + $0x10] sm:$0xff]
        %v307 = vld [vmem:[%s298 + $0x18] sm:$0xff]
        %v308 = vld [vmem:[%s303] sm:$0xff]
        %v309 = vld [vmem:[%s303 + $0x8] sm:$0xff]
        %v310 = vld [vmem:[%s303 + $0x10] sm:$0xff]
        %v311 = vld [vmem:[%s303 + $0x18] sm:$0xff]
        %v312 = vld [vmem:[%s4] sm:$0xff]
        %v313 = vld [vmem:[%s4 + $0x8] sm:$0xff]
        %v314 = vld [vmem:[%s4 + $0x10] sm:$0xff]
        %v315 = vld [vmem:[%s4 + $0x18] sm:$0xff]
        %v316 = vld [vmem:[%s5] sm:$0xff]
        %v317 = vld [vmem:[%s5 + $0x8] sm:$0xff]
        %v318 = vld [vmem:[%s5 + $0x10] sm:$0xff]
        %v319 = vld [vmem:[%s5 + $0x18] sm:$0xff]
        %321 = vset.pattern.permute.xlu0 0
        %322 = vperm.xlu0 %321, %v316
        %v323 = vpop.permute.xlu0 %322
        %326 = vset.pattern.permute.xlu0 0
        %327 = vperm.xlu0 %326, %v317
        %v328 = vpop.permute.xlu0 %327
        %331 = vset.pattern.permute.xlu0 0
        %332 = vperm.xlu0 %331, %v318
        %v333 = vpop.permute.xlu0 %332
        %336 = vset.pattern.permute.xlu0 0
        %337 = vperm.xlu0 %336, %v319
        %v338 = vpop.permute.xlu0 %337
        %vm340 = vcmask 130048
        %v342 = vsel %vm340, %v312, 0
        %v345 = vsel %vm340, %v313, 0
        %v348 = vsel %vm340, %v314, 0
        %v351 = vsel %vm340, %v315, 0
        %353 = vmatpush.msra.mxu0 0.0
        %354 = vmatpush.msra.mxu0 0.0
        %355 = vmatpush.msra.mxu0 0.0
        %356 = vmatpush.msra.mxu0 0.0
        %357 = vmatpush.msra.mxu0 0.0
        %358 = vmatpush.msra.mxu0 0.0
        %359 = vmatpush.msra.mxu0 0.0
        %360 = vmatpush.msra.mxu0 0.0
        %361 = vmatpush.msra.mxu0 0.0
        %362 = vmatpush.msra.mxu0 0.0
        %363 = vmatpush.msra.mxu0 0.0
        %364 = vmatpush.msra.mxu0 0.0
        %365 = vmatpush.msra.mxu0 0.0
        %366 = vmatpush.msra.mxu0 0.0
        %367 = vmatpush.msra.mxu0 %v310
        %368 = vmatpush.msra.mxu0 %v308
        %369 = vmatmul.f32.gmra.mxu0 %v342
        %v370 = vpop.f32.mrf.mxu0
        %v371 = vadd.f32 %v323, %v370
        %372 = vmatmul.f32.gmra.mxu0 %v345
        %v373 = vpop.f32.mrf.mxu0
        %v374 = vadd.f32 %v328, %v373
        %375 = vmatmul.f32.gmra.mxu0 %v348
        %v376 = vpop.f32.mrf.mxu0
        %v377 = vadd.f32 %v333, %v376
        %378 = vmatmul.f32.gmra.mxu0 %v351
        %v379 = vpop.f32.mrf.mxu0
        %v380 = vadd.f32 %v338, %v379
        %381 = vdwg.mxu0
        %382 = vmatpush.msra.mxu0 0.0
        %383 = vmatpush.msra.mxu0 0.0
        %384 = vmatpush.msra.mxu0 0.0
        %385 = vmatpush.msra.mxu0 0.0
        %386 = vmatpush.msra.mxu0 0.0
        %387 = vmatpush.msra.mxu0 0.0
        %388 = vmatpush.msra.mxu0 0.0
        %389 = vmatpush.msra.mxu0 0.0
        %390 = vmatpush.msra.mxu0 0.0
        %391 = vmatpush.msra.mxu0 0.0
        %392 = vmatpush.msra.mxu0 0.0
        %393 = vmatpush.msra.mxu0 0.0
        %394 = vmatpush.msra.mxu0 0.0
        %395 = vmatpush.msra.mxu0 0.0
        %396 = vmatpush.msra.mxu0 %v311
        %397 = vmatpush.msra.mxu0 %v309
        %398 = vmatmul.f32.gmra.mxu0 %v342
        %v399 = vpop.f32.mrf.mxu0
        %v400 = vadd.f32 %v323, %v399
        %401 = vmatmul.f32.gmra.mxu0 %v345
        %v402 = vpop.f32.mrf.mxu0
        %v403 = vadd.f32 %v328, %v402
        %404 = vmatmul.f32.gmra.mxu0 %v348
        %v405 = vpop.f32.mrf.mxu0
        %v406 = vadd.f32 %v333, %v405
        %407 = vmatmul.f32.gmra.mxu0 %v351
        %v408 = vpop.f32.mrf.mxu0
        %v409 = vadd.f32 %v338, %v408
        %410 = vdwg.mxu0
        %v411 = vld [vmem:[#allocation2] sm:$0xff]
        %v412 = vld [vmem:[#allocation2 + $0x8] sm:$0xff]
        %v413 = vld [vmem:[#allocation2 + $0x10] sm:$0xff]
        %v414 = vld [vmem:[#allocation2 + $0x18] sm:$0xff]
        %vm415 = vcmask 261120
        %v417 = vsel %vm415, %v411, 0
        %v420 = vsel %vm415, %v412, 0
        %v423 = vsel %vm415, %v413, 0
        %v426 = vsel %vm415, %v414, 0
        %428 = vmatpush.msra.mxu0 0.0
        %429 = vmatpush.msra.mxu0 0.0
        %430 = vmatpush.msra.mxu0 0.0
        %431 = vmatpush.msra.mxu0 0.0
        %432 = vmatpush.msra.mxu0 0.0
        %433 = vmatpush.msra.mxu0 0.0
        %434 = vmatpush.msra.mxu0 0.0
        %435 = vmatpush.msra.mxu0 0.0
        %436 = vmatpush.msra.mxu0 0.0
        %437 = vmatpush.msra.mxu0 0.0
        %438 = vmatpush.msra.mxu0 0.0
        %439 = vmatpush.msra.mxu0 0.0
        %440 = vmatpush.msra.mxu0 %v307
        %441 = vmatpush.msra.mxu0 %v306
        %442 = vmatpush.msra.mxu0 %v305
        %443 = vmatpush.msra.mxu0 %v304
        %444 = vmatmul.f32.gmra.mxu0 %v417
        %v445 = vpop.f32.mrf.mxu0
        %v446 = vadd.f32 0.0, %v445
        %447 = vmatmul.f32.gmra.mxu0 %v420
        %v448 = vpop.f32.mrf.mxu0
        %v449 = vadd.f32 0.0, %v448
        %450 = vmatmul.f32.gmra.mxu0 %v423
        %v451 = vpop.f32.mrf.mxu0
        %v452 = vadd.f32 0.0, %v451
        %453 = vmatmul.f32.gmra.mxu0 %v426
        %v454 = vpop.f32.mrf.mxu0
        %v455 = vadd.f32 0.0, %v454
        %456 = vdwg.mxu0
        %v457 = vld [vmem:[#allocation5] sm:$0xff]
        %v458 = vld [vmem:[#allocation5 + $0x8] sm:$0xff]
        %v459 = vld [vmem:[#allocation5 + $0x10] sm:$0xff]
        %v460 = vld [vmem:[#allocation5 + $0x18] sm:$0xff]
        %v462 = vsel %vm340, %v446, 0
        %v465 = vsel %vm340, %v449, 0
        %v468 = vsel %vm340, %v452, 0
        %v471 = vsel %vm340, %v455, 0
        %473 = vmatpush.msra.mxu0 0.0
        %474 = vmatpush.msra.mxu0 0.0
        %475 = vmatpush.msra.mxu0 0.0
        %476 = vmatpush.msra.mxu0 0.0
        %477 = vmatpush.msra.mxu0 0.0
        %478 = vmatpush.msra.mxu0 0.0
        %479 = vmatpush.msra.mxu0 0.0
        %480 = vmatpush.msra.mxu0 0.0
        %481 = vmatpush.msra.mxu0 0.0
        %482 = vmatpush.msra.mxu0 0.0
        %483 = vmatpush.msra.mxu0 0.0
        %484 = vmatpush.msra.mxu0 0.0
        %485 = vmatpush.msra.mxu0 0.0
        %486 = vmatpush.msra.mxu0 0.0
        %487 = vmatpush.msra.mxu0 %v459
        %488 = vmatpush.msra.mxu0 %v457
        %489 = vmatmul.f32.gmra.mxu0 %v462
        %v490 = vpop.f32.mrf.mxu0
        %v491 = vadd.f32 0.0, %v490
        %492 = vmatmul.f32.gmra.mxu0 %v465
        %v493 = vpop.f32.mrf.mxu0
        %v494 = vadd.f32 0.0, %v493
        %495 = vmatmul.f32.gmra.mxu0 %v468
        %v496 = vpop.f32.mrf.mxu0
        %v497 = vadd.f32 0.0, %v496
        %498 = vmatmul.f32.gmra.mxu0 %v471
        %v499 = vpop.f32.mrf.mxu0
        %v500 = vadd.f32 0.0, %v499
        %501 = vdwg.mxu0
        %502 = vmatpush.msra.mxu0 0.0
        %503 = vmatpush.msra.mxu0 0.0
        %504 = vmatpush.msra.mxu0 0.0
        %505 = vmatpush.msra.mxu0 0.0
        %506 = vmatpush.msra.mxu0 0.0
        %507 = vmatpush.msra.mxu0 0.0
        %508 = vmatpush.msra.mxu0 0.0
        %509 = vmatpush.msra.mxu0 0.0
        %510 = vmatpush.msra.mxu0 0.0
        %511 = vmatpush.msra.mxu0 0.0
        %512 = vmatpush.msra.mxu0 0.0
        %513 = vmatpush.msra.mxu0 0.0
        %514 = vmatpush.msra.mxu0 0.0
        %515 = vmatpush.msra.mxu0 0.0
        %516 = vmatpush.msra.mxu0 %v460
        %517 = vmatpush.msra.mxu0 %v458
        %518 = vmatmul.f32.gmra.mxu0 %v462
        %v519 = vpop.f32.mrf.mxu0
        %v520 = vadd.f32 0.0, %v519
        %521 = vmatmul.f32.gmra.mxu0 %v465
        %v522 = vpop.f32.mrf.mxu0
        %v523 = vadd.f32 0.0, %v522
        %524 = vmatmul.f32.gmra.mxu0 %v468
        %v525 = vpop.f32.mrf.mxu0
        %v526 = vadd.f32 0.0, %v525
        %527 = vmatmul.f32.gmra.mxu0 %v471
        %v528 = vpop.f32.mrf.mxu0
        %v529 = vadd.f32 0.0, %v528
        %530 = vdwg.mxu0
        %v531 = vadd.f32 %v371, %v491
        %v532 = vadd.f32 %v400, %v520
        %v533 = vadd.f32 %v374, %v494
        %v534 = vadd.f32 %v403, %v523
        %v535 = vadd.f32 %v377, %v497
        %v536 = vadd.f32 %v406, %v526
        %v537 = vadd.f32 %v380, %v500
        %v538 = vadd.f32 %v409, %v529
        %s539 = scalar_lea.vmem [#allocation2], 32
        %v540 = vld [vmem:[%s539] sm:$0xff]
        %v541 = vld [vmem:[%s539 + $0x8] sm:$0xff]
        %v542 = vld [vmem:[%s539 + $0x10] sm:$0xff]
        %v543 = vld [vmem:[%s539 + $0x18] sm:$0xff]
        %v545 = vsel %vm415, %v540, 0
        %v548 = vsel %vm415, %v541, 0
        %v551 = vsel %vm415, %v542, 0
        %v554 = vsel %vm415, %v543, 0
        %556 = vmatpush.msra.mxu0 0.0
        %557 = vmatpush.msra.mxu0 0.0
        %558 = vmatpush.msra.mxu0 0.0
        %559 = vmatpush.msra.mxu0 0.0
        %560 = vmatpush.msra.mxu0 0.0
        %561 = vmatpush.msra.mxu0 0.0
        %562 = vmatpush.msra.mxu0 0.0
        %563 = vmatpush.msra.mxu0 0.0
        %564 = vmatpush.msra.mxu0 0.0
        %565 = vmatpush.msra.mxu0 0.0
        %566 = vmatpush.msra.mxu0 0.0
        %567 = vmatpush.msra.mxu0 0.0
        %568 = vmatpush.msra.mxu0 %v307
        %569 = vmatpush.msra.mxu0 %v306
        %570 = vmatpush.msra.mxu0 %v305
        %571 = vmatpush.msra.mxu0 %v304
        %572 = vmatmul.f32.gmra.mxu0 %v545
        %v573 = vpop.f32.mrf.mxu0
        %v574 = vadd.f32 0.0, %v573
        %575 = vmatmul.f32.gmra.mxu0 %v548
        %v576 = vpop.f32.mrf.mxu0
        %v577 = vadd.f32 0.0, %v576
        %578 = vmatmul.f32.gmra.mxu0 %v551
        %v579 = vpop.f32.mrf.mxu0
        %v580 = vadd.f32 0.0, %v579
        %581 = vmatmul.f32.gmra.mxu0 %v554
        %v582 = vpop.f32.mrf.mxu0
        %v583 = vadd.f32 0.0, %v582
        %584 = vdwg.mxu0
        %s585 = scalar_lea.vmem [#allocation5], 32
        %v586 = vld [vmem:[%s585] sm:$0xff]
        %v587 = vld [vmem:[%s585 + $0x8] sm:$0xff]
        %v588 = vld [vmem:[%s585 + $0x10] sm:$0xff]
        %v589 = vld [vmem:[%s585 + $0x18] sm:$0xff]
        %v591 = vsel %vm340, %v574, 0
        %v594 = vsel %vm340, %v577, 0
        %v597 = vsel %vm340, %v580, 0
        %v600 = vsel %vm340, %v583, 0
        %602 = vmatpush.msra.mxu0 0.0
        %603 = vmatpush.msra.mxu0 0.0
        %604 = vmatpush.msra.mxu0 0.0
        %605 = vmatpush.msra.mxu0 0.0
        %606 = vmatpush.msra.mxu0 0.0
        %607 = vmatpush.msra.mxu0 0.0
        %608 = vmatpush.msra.mxu0 0.0
        %609 = vmatpush.msra.mxu0 0.0
        %610 = vmatpush.msra.mxu0 0.0
        %611 = vmatpush.msra.mxu0 0.0
        %612 = vmatpush.msra.mxu0 0.0
        %613 = vmatpush.msra.mxu0 0.0
        %614 = vmatpush.msra.mxu0 0.0
        %615 = vmatpush.msra.mxu0 0.0
        %616 = vmatpush.msra.mxu0 %v588
        %617 = vmatpush.msra.mxu0 %v586
        %618 = vmatmul.f32.gmra.mxu0 %v591
        %v619 = vpop.f32.mrf.mxu0
        %v620 = vadd.f32 0.0, %v619
        %621 = vmatmul.f32.gmra.mxu0 %v594
        %v622 = vpop.f32.mrf.mxu0
        %v623 = vadd.f32 0.0, %v622
        %624 = vmatmul.f32.gmra.mxu0 %v597
        %v625 = vpop.f32.mrf.mxu0
        %v626 = vadd.f32 0.0, %v625
        %627 = vmatmul.f32.gmra.mxu0 %v600
        %v628 = vpop.f32.mrf.mxu0
        %v629 = vadd.f32 0.0, %v628
        %630 = vdwg.mxu0
        %631 = vmatpush.msra.mxu0 0.0
        %632 = vmatpush.msra.mxu0 0.0
        %633 = vmatpush.msra.mxu0 0.0
        %634 = vmatpush.msra.mxu0 0.0
        %635 = vmatpush.msra.mxu0 0.0
        %636 = vmatpush.msra.mxu0 0.0
        %637 = vmatpush.msra.mxu0 0.0
        %638 = vmatpush.msra.mxu0 0.0
        %639 = vmatpush.msra.mxu0 0.0
        %640 = vmatpush.msra.mxu0 0.0
        %641 = vmatpush.msra.mxu0 0.0
        %642 = vmatpush.msra.mxu0 0.0
        %643 = vmatpush.msra.mxu0 0.0
        %644 = vmatpush.msra.mxu0 0.0
        %645 = vmatpush.msra.mxu0 %v589
        %646 = vmatpush.msra.mxu0 %v587
        %647 = vmatmul.f32.gmra.mxu0 %v591
        %v648 = vpop.f32.mrf.mxu0
        %v649 = vadd.f32 0.0, %v648
        %650 = vmatmul.f32.gmra.mxu0 %v594
        %v651 = vpop.f32.mrf.mxu0
        %v652 = vadd.f32 0.0, %v651
        %653 = vmatmul.f32.gmra.mxu0 %v597
        %v654 = vpop.f32.mrf.mxu0
        %v655 = vadd.f32 0.0, %v654
        %656 = vmatmul.f32.gmra.mxu0 %v600
        %v657 = vpop.f32.mrf.mxu0
        %v658 = vadd.f32 0.0, %v657
        %659 = vdwg.mxu0
        %v660 = vadd.f32 %v531, %v620
        %v661 = vadd.f32 %v532, %v649
        %v662 = vadd.f32 %v533, %v623
        %v663 = vadd.f32 %v534, %v652
        %v664 = vadd.f32 %v535, %v626
        %v665 = vadd.f32 %v536, %v655
        %v666 = vadd.f32 %v537, %v629
        %v667 = vadd.f32 %v538, %v658
        %s668 = scalar_lea.vmem [#allocation2], 64
        %v669 = vld [vmem:[%s668] sm:$0xff]
        %v670 = vld [vmem:[%s668 + $0x8] sm:$0xff]
        %v671 = vld [vmem:[%s668 + $0x10] sm:$0xff]
        %v672 = vld [vmem:[%s668 + $0x18] sm:$0xff]
        %v674 = vsel %vm415, %v669, 0
        %v677 = vsel %vm415, %v670, 0
        %v680 = vsel %vm415, %v671, 0
        %v683 = vsel %vm415, %v672, 0
        %685 = vmatpush.msra.mxu0 0.0
        %686 = vmatpush.msra.mxu0 0.0
        %687 = vmatpush.msra.mxu0 0.0
        %688 = vmatpush.msra.mxu0 0.0
        %689 = vmatpush.msra.mxu0 0.0
        %690 = vmatpush.msra.mxu0 0.0
        %691 = vmatpush.msra.mxu0 0.0
        %692 = vmatpush.msra.mxu0 0.0
        %693 = vmatpush.msra.mxu0 0.0
        %694 = vmatpush.msra.mxu0 0.0
        %695 = vmatpush.msra.mxu0 0.0
        %696 = vmatpush.msra.mxu0 0.0
        %697 = vmatpush.msra.mxu0 %v307
        %698 = vmatpush.msra.mxu0 %v306
        %699 = vmatpush.msra.mxu0 %v305
        %700 = vmatpush.msra.mxu0 %v304
        %701 = vmatmul.f32.gmra.mxu0 %v674
        %v702 = vpop.f32.mrf.mxu0
        %v703 = vadd.f32 0.0, %v702
        %704 = vmatmul.f32.gmra.mxu0 %v677
        %v705 = vpop.f32.mrf.mxu0
        %v706 = vadd.f32 0.0, %v705
        %707 = vmatmul.f32.gmra.mxu0 %v680
        %v708 = vpop.f32.mrf.mxu0
        %v709 = vadd.f32 0.0, %v708
        %710 = vmatmul.f32.gmra.mxu0 %v683
        %v711 = vpop.f32.mrf.mxu0
        %v712 = vadd.f32 0.0, %v711
        %713 = vdwg.mxu0
        %s714 = scalar_lea.vmem [#allocation5], 64
        %v715 = vld [vmem:[%s714] sm:$0xff]
        %v716 = vld [vmem:[%s714 + $0x8] sm:$0xff]
        %v717 = vld [vmem:[%s714 + $0x10] sm:$0xff]
        %v718 = vld [vmem:[%s714 + $0x18] sm:$0xff]
        %v720 = vsel %vm340, %v703, 0
        %v723 = vsel %vm340, %v706, 0
        %v726 = vsel %vm340, %v709, 0
        %v729 = vsel %vm340, %v712, 0
        %731 = vmatpush.msra.mxu0 0.0
        %732 = vmatpush.msra.mxu0 0.0
        %733 = vmatpush.msra.mxu0 0.0
        %734 = vmatpush.msra.mxu0 0.0
        %735 = vmatpush.msra.mxu0 0.0
        %736 = vmatpush.msra.mxu0 0.0
        %737 = vmatpush.msra.mxu0 0.0
        %738 = vmatpush.msra.mxu0 0.0
        %739 = vmatpush.msra.mxu0 0.0
        %740 = vmatpush.msra.mxu0 0.0
        %741 = vmatpush.msra.mxu0 0.0
        %742 = vmatpush.msra.mxu0 0.0
        %743 = vmatpush.msra.mxu0 0.0
        %744 = vmatpush.msra.mxu0 0.0
        %745 = vmatpush.msra.mxu0 %v717
        %746 = vmatpush.msra.mxu0 %v715
        %747 = vmatmul.f32.gmra.mxu0 %v720
        %v748 = vpop.f32.mrf.mxu0
        %v749 = vadd.f32 0.0, %v748
        %750 = vmatmul.f32.gmra.mxu0 %v723
        %v751 = vpop.f32.mrf.mxu0
        %v752 = vadd.f32 0.0, %v751
        %753 = vmatmul.f32.gmra.mxu0 %v726
        %v754 = vpop.f32.mrf.mxu0
        %v755 = vadd.f32 0.0, %v754
        %756 = vmatmul.f32.gmra.mxu0 %v729
        %v757 = vpop.f32.mrf.mxu0
        %v758 = vadd.f32 0.0, %v757
        %759 = vdwg.mxu0
        %760 = vmatpush.msra.mxu0 0.0
        %761 = vmatpush.msra.mxu0 0.0
        %762 = vmatpush.msra.mxu0 0.0
        %763 = vmatpush.msra.mxu0 0.0
        %764 = vmatpush.msra.mxu0 0.0
        %765 = vmatpush.msra.mxu0 0.0
        %766 = vmatpush.msra.mxu0 0.0
        %767 = vmatpush.msra.mxu0 0.0
        %768 = vmatpush.msra.mxu0 0.0
        %769 = vmatpush.msra.mxu0 0.0
        %770 = vmatpush.msra.mxu0 0.0
        %771 = vmatpush.msra.mxu0 0.0
        %772 = vmatpush.msra.mxu0 0.0
        %773 = vmatpush.msra.mxu0 0.0
        %774 = vmatpush.msra.mxu0 %v718
        %775 = vmatpush.msra.mxu0 %v716
        %776 = vmatmul.f32.gmra.mxu0 %v720
        %v777 = vpop.f32.mrf.mxu0
        %v778 = vadd.f32 0.0, %v777
        %779 = vmatmul.f32.gmra.mxu0 %v723
        %v780 = vpop.f32.mrf.mxu0
        %v781 = vadd.f32 0.0, %v780
        %782 = vmatmul.f32.gmra.mxu0 %v726
        %v783 = vpop.f32.mrf.mxu0
        %v784 = vadd.f32 0.0, %v783
        %785 = vmatmul.f32.gmra.mxu0 %v729
        %v786 = vpop.f32.mrf.mxu0
        %v787 = vadd.f32 0.0, %v786
        %788 = vdwg.mxu0
        %v789 = vadd.f32 %v660, %v749
        %v790 = vadd.f32 %v661, %v778
        %v791 = vadd.f32 %v662, %v752
        %v792 = vadd.f32 %v663, %v781
        %v793 = vadd.f32 %v664, %v755
        %v794 = vadd.f32 %v665, %v784
        %v795 = vadd.f32 %v666, %v758
        %v796 = vadd.f32 %v667, %v787
        %s797 = scalar_lea.vmem [#allocation2], 96
        %v798 = vld [vmem:[%s797] sm:$0xff]
        %v799 = vld [vmem:[%s797 + $0x8] sm:$0xff]
        %v800 = vld [vmem:[%s797 + $0x10] sm:$0xff]
        %v801 = vld [vmem:[%s797 + $0x18] sm:$0xff]
        %v803 = vsel %vm415, %v798, 0
        %v806 = vsel %vm415, %v799, 0
        %v809 = vsel %vm415, %v800, 0
        %v812 = vsel %vm415, %v801, 0
        %814 = vmatpush.msra.mxu0 0.0
        %815 = vmatpush.msra.mxu0 0.0
        %816 = vmatpush.msra.mxu0 0.0
        %817 = vmatpush.msra.mxu0 0.0
        %818 = vmatpush.msra.mxu0 0.0
        %819 = vmatpush.msra.mxu0 0.0
        %820 = vmatpush.msra.mxu0 0.0
        %821 = vmatpush.msra.mxu0 0.0
        %822 = vmatpush.msra.mxu0 0.0
        %823 = vmatpush.msra.mxu0 0.0
        %824 = vmatpush.msra.mxu0 0.0
        %825 = vmatpush.msra.mxu0 0.0
        %826 = vmatpush.msra.mxu0 %v307
        %827 = vmatpush.msra.mxu0 %v306
        %828 = vmatpush.msra.mxu0 %v305
        %829 = vmatpush.msra.mxu0 %v304
        %830 = vmatmul.f32.gmra.mxu0 %v803
        %v831 = vpop.f32.mrf.mxu0
        %v832 = vadd.f32 0.0, %v831
        %833 = vmatmul.f32.gmra.mxu0 %v806
        %v834 = vpop.f32.mrf.mxu0
        %v835 = vadd.f32 0.0, %v834
        %836 = vmatmul.f32.gmra.mxu0 %v809
        %v837 = vpop.f32.mrf.mxu0
        %v838 = vadd.f32 0.0, %v837
        %839 = vmatmul.f32.gmra.mxu0 %v812
        %v840 = vpop.f32.mrf.mxu0
        %v841 = vadd.f32 0.0, %v840
        %842 = vdwg.mxu0
        %s843 = scalar_lea.vmem [#allocation5], 96
        %v844 = vld [vmem:[%s843] sm:$0xff]
        %v845 = vld [vmem:[%s843 + $0x8] sm:$0xff]
        %v846 = vld [vmem:[%s843 + $0x10] sm:$0xff]
        %v847 = vld [vmem:[%s843 + $0x18] sm:$0xff]
        %v849 = vsel %vm340, %v832, 0
        %v852 = vsel %vm340, %v835, 0
        %v855 = vsel %vm340, %v838, 0
        %v858 = vsel %vm340, %v841, 0
        %860 = vmatpush.msra.mxu0 0.0
        %861 = vmatpush.msra.mxu0 0.0
        %862 = vmatpush.msra.mxu0 0.0
        %863 = vmatpush.msra.mxu0 0.0
        %864 = vmatpush.msra.mxu0 0.0
        %865 = vmatpush.msra.mxu0 0.0
        %866 = vmatpush.msra.mxu0 0.0
        %867 = vmatpush.msra.mxu0 0.0
        %868 = vmatpush.msra.mxu0 0.0
        %869 = vmatpush.msra.mxu0 0.0
        %870 = vmatpush.msra.mxu0 0.0
        %871 = vmatpush.msra.mxu0 0.0
        %872 = vmatpush.msra.mxu0 0.0
        %873 = vmatpush.msra.mxu0 0.0
        %874 = vmatpush.msra.mxu0 %v846
        %875 = vmatpush.msra.mxu0 %v844
        %876 = vmatmul.f32.gmra.mxu0 %v849
        %v877 = vpop.f32.mrf.mxu0
        %v878 = vadd.f32 0.0, %v877
        %879 = vmatmul.f32.gmra.mxu0 %v852
        %v880 = vpop.f32.mrf.mxu0
        %v881 = vadd.f32 0.0, %v880
        %882 = vmatmul.f32.gmra.mxu0 %v855
        %v883 = vpop.f32.mrf.mxu0
        %v884 = vadd.f32 0.0, %v883
        %885 = vmatmul.f32.gmra.mxu0 %v858
        %v886 = vpop.f32.mrf.mxu0
        %v887 = vadd.f32 0.0, %v886
        %888 = vdwg.mxu0
        %889 = vmatpush.msra.mxu0 0.0
        %890 = vmatpush.msra.mxu0 0.0
        %891 = vmatpush.msra.mxu0 0.0
        %892 = vmatpush.msra.mxu0 0.0
        %893 = vmatpush.msra.mxu0 0.0
        %894 = vmatpush.msra.mxu0 0.0
        %895 = vmatpush.msra.mxu0 0.0
        %896 = vmatpush.msra.mxu0 0.0
        %897 = vmatpush.msra.mxu0 0.0
        %898 = vmatpush.msra.mxu0 0.0
        %899 = vmatpush.msra.mxu0 0.0
        %900 = vmatpush.msra.mxu0 0.0
        %901 = vmatpush.msra.mxu0 0.0
        %902 = vmatpush.msra.mxu0 0.0
        %903 = vmatpush.msra.mxu0 %v847
        %904 = vmatpush.msra.mxu0 %v845
        %905 = vmatmul.f32.gmra.mxu0 %v849
        %v906 = vpop.f32.mrf.mxu0
        %v907 = vadd.f32 0.0, %v906
        %908 = vmatmul.f32.gmra.mxu0 %v852
        %v909 = vpop.f32.mrf.mxu0
        %v910 = vadd.f32 0.0, %v909
        %911 = vmatmul.f32.gmra.mxu0 %v855
        %v912 = vpop.f32.mrf.mxu0
        %v913 = vadd.f32 0.0, %v912
        %914 = vmatmul.f32.gmra.mxu0 %v858
        %v915 = vpop.f32.mrf.mxu0
        %v916 = vadd.f32 0.0, %v915
        %917 = vdwg.mxu0
        %v918 = vadd.f32 %v789, %v878
        %v919 = vadd.f32 %v790, %v907
        %v920 = vadd.f32 %v791, %v881
        %v921 = vadd.f32 %v792, %v910
        %v922 = vadd.f32 %v793, %v884
        %v923 = vadd.f32 %v794, %v913
        %v924 = vadd.f32 %v795, %v887
        %v925 = vadd.f32 %v796, %v916
        %s926 = scalar_lea.vmem [#allocation2], 128
        %v927 = vld [vmem:[%s926] sm:$0xff]
        %v928 = vld [vmem:[%s926 + $0x8] sm:$0xff]
        %v929 = vld [vmem:[%s926 + $0x10] sm:$0xff]
        %v930 = vld [vmem:[%s926 + $0x18] sm:$0xff]
        %v932 = vsel %vm415, %v927, 0
        %v935 = vsel %vm415, %v928, 0
        %v938 = vsel %vm415, %v929, 0
        %v941 = vsel %vm415, %v930, 0
        %943 = vmatpush.msra.mxu0 0.0
        %944 = vmatpush.msra.mxu0 0.0
        %945 = vmatpush.msra.mxu0 0.0
        %946 = vmatpush.msra.mxu0 0.0
        %947 = vmatpush.msra.mxu0 0.0
        %948 = vmatpush.msra.mxu0 0.0
        %949 = vmatpush.msra.mxu0 0.0
        %950 = vmatpush.msra.mxu0 0.0
        %951 = vmatpush.msra.mxu0 0.0
        %952 = vmatpush.msra.mxu0 0.0
        %953 = vmatpush.msra.mxu0 0.0
        %954 = vmatpush.msra.mxu0 0.0
        %955 = vmatpush.msra.mxu0 %v307
        %956 = vmatpush.msra.mxu0 %v306
        %957 = vmatpush.msra.mxu0 %v305
        %958 = vmatpush.msra.mxu0 %v304
        %959 = vmatmul.f32.gmra.mxu0 %v932
        %v960 = vpop.f32.mrf.mxu0
        %v961 = vadd.f32 0.0, %v960
        %962 = vmatmul.f32.gmra.mxu0 %v935
        %v963 = vpop.f32.mrf.mxu0
        %v964 = vadd.f32 0.0, %v963
        %965 = vmatmul.f32.gmra.mxu0 %v938
        %v966 = vpop.f32.mrf.mxu0
        %v967 = vadd.f32 0.0, %v966
        %968 = vmatmul.f32.gmra.mxu0 %v941
        %v969 = vpop.f32.mrf.mxu0
        %v970 = vadd.f32 0.0, %v969
        %971 = vdwg.mxu0
        %s972 = scalar_lea.vmem [#allocation5], 128
        %v973 = vld [vmem:[%s972] sm:$0xff]
        %v974 = vld [vmem:[%s972 + $0x8] sm:$0xff]
        %v975 = vld [vmem:[%s972 + $0x10] sm:$0xff]
        %v976 = vld [vmem:[%s972 + $0x18] sm:$0xff]
        %v978 = vsel %vm340, %v961, 0
        %v981 = vsel %vm340, %v964, 0
        %v984 = vsel %vm340, %v967, 0
        %v987 = vsel %vm340, %v970, 0
        %989 = vmatpush.msra.mxu0 0.0
        %990 = vmatpush.msra.mxu0 0.0
        %991 = vmatpush.msra.mxu0 0.0
        %992 = vmatpush.msra.mxu0 0.0
        %993 = vmatpush.msra.mxu0 0.0
        %994 = vmatpush.msra.mxu0 0.0
        %995 = vmatpush.msra.mxu0 0.0
        %996 = vmatpush.msra.mxu0 0.0
        %997 = vmatpush.msra.mxu0 0.0
        %998 = vmatpush.msra.mxu0 0.0
        %999 = vmatpush.msra.mxu0 0.0
        %1000 = vmatpush.msra.mxu0 0.0
        %1001 = vmatpush.msra.mxu0 0.0
        %1002 = vmatpush.msra.mxu0 0.0
        %1003 = vmatpush.msra.mxu0 %v975
        %1004 = vmatpush.msra.mxu0 %v973
        %1005 = vmatmul.f32.gmra.mxu0 %v978
        %v1006 = vpop.f32.mrf.mxu0
        %v1007 = vadd.f32 0.0, %v1006
        %1008 = vmatmul.f32.gmra.mxu0 %v981
        %v1009 = vpop.f32.mrf.mxu0
        %v1010 = vadd.f32 0.0, %v1009
        %1011 = vmatmul.f32.gmra.mxu0 %v984
        %v1012 = vpop.f32.mrf.mxu0
        %v1013 = vadd.f32 0.0, %v1012
        %1014 = vmatmul.f32.gmra.mxu0 %v987
        %v1015 = vpop.f32.mrf.mxu0
        %v1016 = vadd.f32 0.0, %v1015
        %1017 = vdwg.mxu0
        %1018 = vmatpush.msra.mxu0 0.0
        %1019 = vmatpush.msra.mxu0 0.0
        %1020 = vmatpush.msra.mxu0 0.0
        %1021 = vmatpush.msra.mxu0 0.0
        %1022 = vmatpush.msra.mxu0 0.0
        %1023 = vmatpush.msra.mxu0 0.0
        %1024 = vmatpush.msra.mxu0 0.0
        %1025 = vmatpush.msra.mxu0 0.0
        %1026 = vmatpush.msra.mxu0 0.0
        %1027 = vmatpush.msra.mxu0 0.0
        %1028 = vmatpush.msra.mxu0 0.0
        %1029 = vmatpush.msra.mxu0 0.0
        %1030 = vmatpush.msra.mxu0 0.0
        %1031 = vmatpush.msra.mxu0 0.0
        %1032 = vmatpush.msra.mxu0 %v976
        %1033 = vmatpush.msra.mxu0 %v974
        %1034 = vmatmul.f32.gmra.mxu0 %v978
        %v1035 = vpop.f32.mrf.mxu0
        %v1036 = vadd.f32 0.0, %v1035
        %1037 = vmatmul.f32.gmra.mxu0 %v981
        %v1038 = vpop.f32.mrf.mxu0
        %v1039 = vadd.f32 0.0, %v1038
        %1040 = vmatmul.f32.gmra.mxu0 %v984
        %v1041 = vpop.f32.mrf.mxu0
        %v1042 = vadd.f32 0.0, %v1041
        %1043 = vmatmul.f32.gmra.mxu0 %v987
        %v1044 = vpop.f32.mrf.mxu0
        %v1045 = vadd.f32 0.0, %v1044
        %1046 = vdwg.mxu0
        %v1047 = vadd.f32 %v918, %v1007
        %v1048 = vadd.f32 %v919, %v1036
        %v1049 = vadd.f32 %v920, %v1010
        %v1050 = vadd.f32 %v921, %v1039
        %v1051 = vadd.f32 %v922, %v1013
        %v1052 = vadd.f32 %v923, %v1042
        %v1053 = vadd.f32 %v924, %v1016
        %v1054 = vadd.f32 %v925, %v1045
        %s1055 = scalar_lea.vmem [#allocation2], 160
        %v1056 = vld [vmem:[%s1055] sm:$0xff]
        %v1057 = vld [vmem:[%s1055 + $0x8] sm:$0xff]
        %v1058 = vld [vmem:[%s1055 + $0x10] sm:$0xff]
        %v1059 = vld [vmem:[%s1055 + $0x18] sm:$0xff]
        %v1061 = vsel %vm415, %v1056, 0
        %v1064 = vsel %vm415, %v1057, 0
        %v1067 = vsel %vm415, %v1058, 0
        %v1070 = vsel %vm415, %v1059, 0
        %1072 = vmatpush.msra.mxu0 0.0
        %1073 = vmatpush.msra.mxu0 0.0
        %1074 = vmatpush.msra.mxu0 0.0
        %1075 = vmatpush.msra.mxu0 0.0
        %1076 = vmatpush.msra.mxu0 0.0
        %1077 = vmatpush.msra.mxu0 0.0
        %1078 = vmatpush.msra.mxu0 0.0
        %1079 = vmatpush.msra.mxu0 0.0
        %1080 = vmatpush.msra.mxu0 0.0
        %1081 = vmatpush.msra.mxu0 0.0
        %1082 = vmatpush.msra.mxu0 0.0
        %1083 = vmatpush.msra.mxu0 0.0
        %1084 = vmatpush.msra.mxu0 %v307
        %1085 = vmatpush.msra.mxu0 %v306
        %1086 = vmatpush.msra.mxu0 %v305
        %1087 = vmatpush.msra.mxu0 %v304
        %1088 = vmatmul.f32.gmra.mxu0 %v1061
        %v1089 = vpop.f32.mrf.mxu0
        %v1090 = vadd.f32 0.0, %v1089
        %1091 = vmatmul.f32.gmra.mxu0 %v1064
        %v1092 = vpop.f32.mrf.mxu0
        %v1093 = vadd.f32 0.0, %v1092
        %1094 = vmatmul.f32.gmra.mxu0 %v1067
        %v1095 = vpop.f32.mrf.mxu0
        %v1096 = vadd.f32 0.0, %v1095
        %1097 = vmatmul.f32.gmra.mxu0 %v1070
        %v1098 = vpop.f32.mrf.mxu0
        %v1099 = vadd.f32 0.0, %v1098
        %1100 = vdwg.mxu0
        %s1101 = scalar_lea.vmem [#allocation5], 160
        %v1102 = vld [vmem:[%s1101] sm:$0xff]
        %v1103 = vld [vmem:[%s1101 + $0x8] sm:$0xff]
        %v1104 = vld [vmem:[%s1101 + $0x10] sm:$0xff]
        %v1105 = vld [vmem:[%s1101 + $0x18] sm:$0xff]
        %v1107 = vsel %vm340, %v1090, 0
        %v1110 = vsel %vm340, %v1093, 0
        %v1113 = vsel %vm340, %v1096, 0
        %v1116 = vsel %vm340, %v1099, 0
        %1118 = vmatpush.msra.mxu0 0.0
        %1119 = vmatpush.msra.mxu0 0.0
        %1120 = vmatpush.msra.mxu0 0.0
        %1121 = vmatpush.msra.mxu0 0.0
        %1122 = vmatpush.msra.mxu0 0.0
        %1123 = vmatpush.msra.mxu0 0.0
        %1124 = vmatpush.msra.mxu0 0.0
        %1125 = vmatpush.msra.mxu0 0.0
        %1126 = vmatpush.msra.mxu0 0.0
        %1127 = vmatpush.msra.mxu0 0.0
        %1128 = vmatpush.msra.mxu0 0.0
        %1129 = vmatpush.msra.mxu0 0.0
        %1130 = vmatpush.msra.mxu0 0.0
        %1131 = vmatpush.msra.mxu0 0.0
        %1132 = vmatpush.msra.mxu0 %v1104
        %1133 = vmatpush.msra.mxu0 %v1102
        %1134 = vmatmul.f32.gmra.mxu0 %v1107
        %v1135 = vpop.f32.mrf.mxu0
        %v1136 = vadd.f32 0.0, %v1135
        %1137 = vmatmul.f32.gmra.mxu0 %v1110
        %v1138 = vpop.f32.mrf.mxu0
        %v1139 = vadd.f32 0.0, %v1138
        %1140 = vmatmul.f32.gmra.mxu0 %v1113
        %v1141 = vpop.f32.mrf.mxu0
        %v1142 = vadd.f32 0.0, %v1141
        %1143 = vmatmul.f32.gmra.mxu0 %v1116
        %v1144 = vpop.f32.mrf.mxu0
        %v1145 = vadd.f32 0.0, %v1144
        %1146 = vdwg.mxu0
        %1147 = vmatpush.msra.mxu0 0.0
        %1148 = vmatpush.msra.mxu0 0.0
        %1149 = vmatpush.msra.mxu0 0.0
        %1150 = vmatpush.msra.mxu0 0.0
        %1151 = vmatpush.msra.mxu0 0.0
        %1152 = vmatpush.msra.mxu0 0.0
        %1153 = vmatpush.msra.mxu0 0.0
        %1154 = vmatpush.msra.mxu0 0.0
        %1155 = vmatpush.msra.mxu0 0.0
        %1156 = vmatpush.msra.mxu0 0.0
        %1157 = vmatpush.msra.mxu0 0.0
        %1158 = vmatpush.msra.mxu0 0.0
        %1159 = vmatpush.msra.mxu0 0.0
        %1160 = vmatpush.msra.mxu0 0.0
        %1161 = vmatpush.msra.mxu0 %v1105
        %1162 = vmatpush.msra.mxu0 %v1103
        %1163 = vmatmul.f32.gmra.mxu0 %v1107
        %v1164 = vpop.f32.mrf.mxu0
        %v1165 = vadd.f32 0.0, %v1164
        %1166 = vmatmul.f32.gmra.mxu0 %v1110
        %v1167 = vpop.f32.mrf.mxu0
        %v1168 = vadd.f32 0.0, %v1167
        %1169 = vmatmul.f32.gmra.mxu0 %v1113
        %v1170 = vpop.f32.mrf.mxu0
        %v1171 = vadd.f32 0.0, %v1170
        %1172 = vmatmul.f32.gmra.mxu0 %v1116
        %v1173 = vpop.f32.mrf.mxu0
        %v1174 = vadd.f32 0.0, %v1173
        %1175 = vdwg.mxu0
        %v1176 = vadd.f32 %v1047, %v1136
        %v1177 = vadd.f32 %v1048, %v1165
        %v1178 = vadd.f32 %v1049, %v1139
        %v1179 = vadd.f32 %v1050, %v1168
        %v1180 = vadd.f32 %v1051, %v1142
        %v1181 = vadd.f32 %v1052, %v1171
        %v1182 = vadd.f32 %v1053, %v1145
        %v1183 = vadd.f32 %v1054, %v1174
        %s1184 = scalar_lea.vmem [#allocation2], 192
        %v1185 = vld [vmem:[%s1184] sm:$0xff]
        %v1186 = vld [vmem:[%s1184 + $0x8] sm:$0xff]
        %v1187 = vld [vmem:[%s1184 + $0x10] sm:$0xff]
        %v1188 = vld [vmem:[%s1184 + $0x18] sm:$0xff]
        %v1190 = vsel %vm415, %v1185, 0
        %v1193 = vsel %vm415, %v1186, 0
        %v1196 = vsel %vm415, %v1187, 0
        %v1199 = vsel %vm415, %v1188, 0
        %1201 = vmatpush.msra.mxu0 0.0
        %1202 = vmatpush.msra.mxu0 0.0
        %1203 = vmatpush.msra.mxu0 0.0
        %1204 = vmatpush.msra.mxu0 0.0
        %1205 = vmatpush.msra.mxu0 0.0
        %1206 = vmatpush.msra.mxu0 0.0
        %1207 = vmatpush.msra.mxu0 0.0
        %1208 = vmatpush.msra.mxu0 0.0
        %1209 = vmatpush.msra.mxu0 0.0
        %1210 = vmatpush.msra.mxu0 0.0
        %1211 = vmatpush.msra.mxu0 0.0
        %1212 = vmatpush.msra.mxu0 0.0
        %1213 = vmatpush.msra.mxu0 %v307
        %1214 = vmatpush.msra.mxu0 %v306
        %1215 = vmatpush.msra.mxu0 %v305
        %1216 = vmatpush.msra.mxu0 %v304
        %1217 = vmatmul.f32.gmra.mxu0 %v1190
        %v1218 = vpop.f32.mrf.mxu0
        %v1219 = vadd.f32 0.0, %v1218
        %1220 = vmatmul.f32.gmra.mxu0 %v1193
        %v1221 = vpop.f32.mrf.mxu0
        %v1222 = vadd.f32 0.0, %v1221
        %1223 = vmatmul.f32.gmra.mxu0 %v1196
        %v1224 = vpop.f32.mrf.mxu0
        %v1225 = vadd.f32 0.0, %v1224
        %1226 = vmatmul.f32.gmra.mxu0 %v1199
        %v1227 = vpop.f32.mrf.mxu0
        %v1228 = vadd.f32 0.0, %v1227
        %1229 = vdwg.mxu0
        %s1230 = scalar_lea.vmem [#allocation5], 192
        %v1231 = vld [vmem:[%s1230] sm:$0xff]
        %v1232 = vld [vmem:[%s1230 + $0x8] sm:$0xff]
        %v1233 = vld [vmem:[%s1230 + $0x10] sm:$0xff]
        %v1234 = vld [vmem:[%s1230 + $0x18] sm:$0xff]
        %v1236 = vsel %vm340, %v1219, 0
        %v1239 = vsel %vm340, %v1222, 0
        %v1242 = vsel %vm340, %v1225, 0
        %v1245 = vsel %vm340, %v1228, 0
        %1247 = vmatpush.msra.mxu0 0.0
        %1248 = vmatpush.msra.mxu0 0.0
        %1249 = vmatpush.msra.mxu0 0.0
        %1250 = vmatpush.msra.mxu0 0.0
        %1251 = vmatpush.msra.mxu0 0.0
        %1252 = vmatpush.msra.mxu0 0.0
        %1253 = vmatpush.msra.mxu0 0.0
        %1254 = vmatpush.msra.mxu0 0.0
        %1255 = vmatpush.msra.mxu0 0.0
        %1256 = vmatpush.msra.mxu0 0.0
        %1257 = vmatpush.msra.mxu0 0.0
        %1258 = vmatpush.msra.mxu0 0.0
        %1259 = vmatpush.msra.mxu0 0.0
        %1260 = vmatpush.msra.mxu0 0.0
        %1261 = vmatpush.msra.mxu0 %v1233
        %1262 = vmatpush.msra.mxu0 %v1231
        %1263 = vmatmul.f32.gmra.mxu0 %v1236
        %v1264 = vpop.f32.mrf.mxu0
        %v1265 = vadd.f32 0.0, %v1264
        %1266 = vmatmul.f32.gmra.mxu0 %v1239
        %v1267 = vpop.f32.mrf.mxu0
        %v1268 = vadd.f32 0.0, %v1267
        %1269 = vmatmul.f32.gmra.mxu0 %v1242
        %v1270 = vpop.f32.mrf.mxu0
        %v1271 = vadd.f32 0.0, %v1270
        %1272 = vmatmul.f32.gmra.mxu0 %v1245
        %v1273 = vpop.f32.mrf.mxu0
        %v1274 = vadd.f32 0.0, %v1273
        %1275 = vdwg.mxu0
        %1276 = vmatpush.msra.mxu0 0.0
        %1277 = vmatpush.msra.mxu0 0.0
        %1278 = vmatpush.msra.mxu0 0.0
        %1279 = vmatpush.msra.mxu0 0.0
        %1280 = vmatpush.msra.mxu0 0.0
        %1281 = vmatpush.msra.mxu0 0.0
        %1282 = vmatpush.msra.mxu0 0.0
        %1283 = vmatpush.msra.mxu0 0.0
        %1284 = vmatpush.msra.mxu0 0.0
        %1285 = vmatpush.msra.mxu0 0.0
        %1286 = vmatpush.msra.mxu0 0.0
        %1287 = vmatpush.msra.mxu0 0.0
        %1288 = vmatpush.msra.mxu0 0.0
        %1289 = vmatpush.msra.mxu0 0.0
        %1290 = vmatpush.msra.mxu0 %v1234
        %1291 = vmatpush.msra.mxu0 %v1232
        %1292 = vmatmul.f32.gmra.mxu0 %v1236
        %v1293 = vpop.f32.mrf.mxu0
        %v1294 = vadd.f32 0.0, %v1293
        %1295 = vmatmul.f32.gmra.mxu0 %v1239
        %v1296 = vpop.f32.mrf.mxu0
        %v1297 = vadd.f32 0.0, %v1296
        %1298 = vmatmul.f32.gmra.mxu0 %v1242
        %v1299 = vpop.f32.mrf.mxu0
        %v1300 = vadd.f32 0.0, %v1299
        %1301 = vmatmul.f32.gmra.mxu0 %v1245
        %v1302 = vpop.f32.mrf.mxu0
        %v1303 = vadd.f32 0.0, %v1302
        %1304 = vdwg.mxu0
        %v1305 = vadd.f32 %v1176, %v1265
        %v1306 = vadd.f32 %v1177, %v1294
        %v1307 = vadd.f32 %v1178, %v1268
        %v1308 = vadd.f32 %v1179, %v1297
        %v1309 = vadd.f32 %v1180, %v1271
        %v1310 = vadd.f32 %v1181, %v1300
        %v1311 = vadd.f32 %v1182, %v1274
        %v1312 = vadd.f32 %v1183, %v1303
        %s1313 = scalar_lea.vmem [#allocation2], 224
        %v1314 = vld [vmem:[%s1313] sm:$0xff]
        %v1315 = vld [vmem:[%s1313 + $0x8] sm:$0xff]
        %v1316 = vld [vmem:[%s1313 + $0x10] sm:$0xff]
        %v1317 = vld [vmem:[%s1313 + $0x18] sm:$0xff]
        %v1319 = vsel %vm415, %v1314, 0
        %v1322 = vsel %vm415, %v1315, 0
        %v1325 = vsel %vm415, %v1316, 0
        %v1328 = vsel %vm415, %v1317, 0
        %1330 = vmatpush.msra.mxu0 0.0
        %1331 = vmatpush.msra.mxu0 0.0
        %1332 = vmatpush.msra.mxu0 0.0
        %1333 = vmatpush.msra.mxu0 0.0
        %1334 = vmatpush.msra.mxu0 0.0
        %1335 = vmatpush.msra.mxu0 0.0
        %1336 = vmatpush.msra.mxu0 0.0
        %1337 = vmatpush.msra.mxu0 0.0
        %1338 = vmatpush.msra.mxu0 0.0
        %1339 = vmatpush.msra.mxu0 0.0
        %1340 = vmatpush.msra.mxu0 0.0
        %1341 = vmatpush.msra.mxu0 0.0
        %1342 = vmatpush.msra.mxu0 %v307
        %1343 = vmatpush.msra.mxu0 %v306
        %1344 = vmatpush.msra.mxu0 %v305
        %1345 = vmatpush.msra.mxu0 %v304
        %1346 = vmatmul.f32.gmra.mxu0 %v1319
        %v1347 = vpop.f32.mrf.mxu0
        %v1348 = vadd.f32 0.0, %v1347
        %1349 = vmatmul.f32.gmra.mxu0 %v1322
        %v1350 = vpop.f32.mrf.mxu0
        %v1351 = vadd.f32 0.0, %v1350
        %1352 = vmatmul.f32.gmra.mxu0 %v1325
        %v1353 = vpop.f32.mrf.mxu0
        %v1354 = vadd.f32 0.0, %v1353
        %1355 = vmatmul.f32.gmra.mxu0 %v1328
        %v1356 = vpop.f32.mrf.mxu0
        %v1357 = vadd.f32 0.0, %v1356
        %1358 = vdwg.mxu0
        %s1359 = scalar_lea.vmem [#allocation5], 224
        %v1360 = vld [vmem:[%s1359] sm:$0xff]
        %v1361 = vld [vmem:[%s1359 + $0x8] sm:$0xff]
        %v1362 = vld [vmem:[%s1359 + $0x10] sm:$0xff]
        %v1363 = vld [vmem:[%s1359 + $0x18] sm:$0xff]
        %v1365 = vsel %vm340, %v1348, 0
        %v1368 = vsel %vm340, %v1351, 0
        %v1371 = vsel %vm340, %v1354, 0
        %v1374 = vsel %vm340, %v1357, 0
        %1376 = vmatpush.msra.mxu0 0.0
        %1377 = vmatpush.msra.mxu0 0.0
        %1378 = vmatpush.msra.mxu0 0.0
        %1379 = vmatpush.msra.mxu0 0.0
        %1380 = vmatpush.msra.mxu0 0.0
        %1381 = vmatpush.msra.mxu0 0.0
        %1382 = vmatpush.msra.mxu0 0.0
        %1383 = vmatpush.msra.mxu0 0.0
        %1384 = vmatpush.msra.mxu0 0.0
        %1385 = vmatpush.msra.mxu0 0.0
        %1386 = vmatpush.msra.mxu0 0.0
        %1387 = vmatpush.msra.mxu0 0.0
        %1388 = vmatpush.msra.mxu0 0.0
        %1389 = vmatpush.msra.mxu0 0.0
        %1390 = vmatpush.msra.mxu0 %v1362
        %1391 = vmatpush.msra.mxu0 %v1360
        %1392 = vmatmul.f32.gmra.mxu0 %v1365
        %v1393 = vpop.f32.mrf.mxu0
        %v1394 = vadd.f32 0.0, %v1393
        %1395 = vmatmul.f32.gmra.mxu0 %v1368
        %v1396 = vpop.f32.mrf.mxu0
        %v1397 = vadd.f32 0.0, %v1396
        %1398 = vmatmul.f32.gmra.mxu0 %v1371
        %v1399 = vpop.f32.mrf.mxu0
        %v1400 = vadd.f32 0.0, %v1399
        %1401 = vmatmul.f32.gmra.mxu0 %v1374
        %v1402 = vpop.f32.mrf.mxu0
        %v1403 = vadd.f32 0.0, %v1402
        %1404 = vdwg.mxu0
        %1405 = vmatpush.msra.mxu0 0.0
        %1406 = vmatpush.msra.mxu0 0.0
        %1407 = vmatpush.msra.mxu0 0.0
        %1408 = vmatpush.msra.mxu0 0.0
        %1409 = vmatpush.msra.mxu0 0.0
        %1410 = vmatpush.msra.mxu0 0.0
        %1411 = vmatpush.msra.mxu0 0.0
        %1412 = vmatpush.msra.mxu0 0.0
        %1413 = vmatpush.msra.mxu0 0.0
        %1414 = vmatpush.msra.mxu0 0.0
        %1415 = vmatpush.msra.mxu0 0.0
        %1416 = vmatpush.msra.mxu0 0.0
        %1417 = vmatpush.msra.mxu0 0.0
        %1418 = vmatpush.msra.mxu0 0.0
        %1419 = vmatpush.msra.mxu0 %v1363
        %1420 = vmatpush.msra.mxu0 %v1361
        %1421 = vmatmul.f32.gmra.mxu0 %v1365
        %v1422 = vpop.f32.mrf.mxu0
        %v1423 = vadd.f32 0.0, %v1422
        %1424 = vmatmul.f32.gmra.mxu0 %v1368
        %v1425 = vpop.f32.mrf.mxu0
        %v1426 = vadd.f32 0.0, %v1425
        %1427 = vmatmul.f32.gmra.mxu0 %v1371
        %v1428 = vpop.f32.mrf.mxu0
        %v1429 = vadd.f32 0.0, %v1428
        %1430 = vmatmul.f32.gmra.mxu0 %v1374
        %v1431 = vpop.f32.mrf.mxu0
        %v1432 = vadd.f32 0.0, %v1431
        %1433 = vdwg.mxu0
        %v1434 = vadd.f32 %v1305, %v1394
        %v1435 = vadd.f32 %v1306, %v1423
        %v1436 = vadd.f32 %v1307, %v1397
        %v1437 = vadd.f32 %v1308, %v1426
        %v1438 = vadd.f32 %v1309, %v1400
        %v1439 = vadd.f32 %v1310, %v1429
        %v1440 = vadd.f32 %v1311, %v1403
        %v1441 = vadd.f32 %v1312, %v1432
        %s1442 = scalar_lea.vmem [#allocation2], 256
        %v1443 = vld [vmem:[%s1442] sm:$0xff]
        %v1444 = vld [vmem:[%s1442 + $0x8] sm:$0xff]
        %v1445 = vld [vmem:[%s1442 + $0x10] sm:$0xff]
        %v1446 = vld [vmem:[%s1442 + $0x18] sm:$0xff]
        %v1448 = vsel %vm415, %v1443, 0
        %v1451 = vsel %vm415, %v1444, 0
        %v1454 = vsel %vm415, %v1445, 0
        %v1457 = vsel %vm415, %v1446, 0
        %1459 = vmatpush.msra.mxu0 0.0
        %1460 = vmatpush.msra.mxu0 0.0
        %1461 = vmatpush.msra.mxu0 0.0
        %1462 = vmatpush.msra.mxu0 0.0
        %1463 = vmatpush.msra.mxu0 0.0
        %1464 = vmatpush.msra.mxu0 0.0
        %1465 = vmatpush.msra.mxu0 0.0
        %1466 = vmatpush.msra.mxu0 0.0
        %1467 = vmatpush.msra.mxu0 0.0
        %1468 = vmatpush.msra.mxu0 0.0
        %1469 = vmatpush.msra.mxu0 0.0
        %1470 = vmatpush.msra.mxu0 0.0
        %1471 = vmatpush.msra.mxu0 %v307
        %1472 = vmatpush.msra.mxu0 %v306
        %1473 = vmatpush.msra.mxu0 %v305
        %1474 = vmatpush.msra.mxu0 %v304
        %1475 = vmatmul.f32.gmra.mxu0 %v1448
        %v1476 = vpop.f32.mrf.mxu0
        %v1477 = vadd.f32 0.0, %v1476
        %1478 = vmatmul.f32.gmra.mxu0 %v1451
        %v1479 = vpop.f32.mrf.mxu0
        %v1480 = vadd.f32 0.0, %v1479
        %1481 = vmatmul.f32.gmra.mxu0 %v1454
        %v1482 = vpop.f32.mrf.mxu0
        %v1483 = vadd.f32 0.0, %v1482
        %1484 = vmatmul.f32.gmra.mxu0 %v1457
        %v1485 = vpop.f32.mrf.mxu0
        %v1486 = vadd.f32 0.0, %v1485
        %1487 = vdwg.mxu0
        %s1488 = scalar_lea.vmem [#allocation5], 256
        %v1489 = vld [vmem:[%s1488] sm:$0xff]
        %v1490 = vld [vmem:[%s1488 + $0x8] sm:$0xff]
        %v1491 = vld [vmem:[%s1488 + $0x10] sm:$0xff]
        %v1492 = vld [vmem:[%s1488 + $0x18] sm:$0xff]
        %v1494 = vsel %vm340, %v1477, 0
        %v1497 = vsel %vm340, %v1480, 0
        %v1500 = vsel %vm340, %v1483, 0
        %v1503 = vsel %vm340, %v1486, 0
        %1505 = vmatpush.msra.mxu0 0.0
        %1506 = vmatpush.msra.mxu0 0.0
        %1507 = vmatpush.msra.mxu0 0.0
        %1508 = vmatpush.msra.mxu0 0.0
        %1509 = vmatpush.msra.mxu0 0.0
        %1510 = vmatpush.msra.mxu0 0.0
        %1511 = vmatpush.msra.mxu0 0.0
        %1512 = vmatpush.msra.mxu0 0.0
        %1513 = vmatpush.msra.mxu0 0.0
        %1514 = vmatpush.msra.mxu0 0.0
        %1515 = vmatpush.msra.mxu0 0.0
        %1516 = vmatpush.msra.mxu0 0.0
        %1517 = vmatpush.msra.mxu0 0.0
        %1518 = vmatpush.msra.mxu0 0.0
        %1519 = vmatpush.msra.mxu0 %v1491
        %1520 = vmatpush.msra.mxu0 %v1489
        %1521 = vmatmul.f32.gmra.mxu0 %v1494
        %v1522 = vpop.f32.mrf.mxu0
        %v1523 = vadd.f32 0.0, %v1522
        %1524 = vmatmul.f32.gmra.mxu0 %v1497
        %v1525 = vpop.f32.mrf.mxu0
        %v1526 = vadd.f32 0.0, %v1525
        %1527 = vmatmul.f32.gmra.mxu0 %v1500
        %v1528 = vpop.f32.mrf.mxu0
        %v1529 = vadd.f32 0.0, %v1528
        %1530 = vmatmul.f32.gmra.mxu0 %v1503
        %v1531 = vpop.f32.mrf.mxu0
        %v1532 = vadd.f32 0.0, %v1531
        %1533 = vdwg.mxu0
        %1534 = vmatpush.msra.mxu0 0.0
        %1535 = vmatpush.msra.mxu0 0.0
        %1536 = vmatpush.msra.mxu0 0.0
        %1537 = vmatpush.msra.mxu0 0.0
        %1538 = vmatpush.msra.mxu0 0.0
        %1539 = vmatpush.msra.mxu0 0.0
        %1540 = vmatpush.msra.mxu0 0.0
        %1541 = vmatpush.msra.mxu0 0.0
        %1542 = vmatpush.msra.mxu0 0.0
        %1543 = vmatpush.msra.mxu0 0.0
        %1544 = vmatpush.msra.mxu0 0.0
        %1545 = vmatpush.msra.mxu0 0.0
        %1546 = vmatpush.msra.mxu0 0.0
        %1547 = vmatpush.msra.mxu0 0.0
        %1548 = vmatpush.msra.mxu0 %v1492
        %1549 = vmatpush.msra.mxu0 %v1490
        %1550 = vmatmul.f32.gmra.mxu0 %v1494
        %v1551 = vpop.f32.mrf.mxu0
        %v1552 = vadd.f32 0.0, %v1551
        %1553 = vmatmul.f32.gmra.mxu0 %v1497
        %v1554 = vpop.f32.mrf.mxu0
        %v1555 = vadd.f32 0.0, %v1554
        %1556 = vmatmul.f32.gmra.mxu0 %v1500
        %v1557 = vpop.f32.mrf.mxu0
        %v1558 = vadd.f32 0.0, %v1557
        %1559 = vmatmul.f32.gmra.mxu0 %v1503
        %v1560 = vpop.f32.mrf.mxu0
        %v1561 = vadd.f32 0.0, %v1560
        %1562 = vdwg.mxu0
        %v1563 = vadd.f32 %v1434, %v1523
        %v1564 = vadd.f32 %v1435, %v1552
        %v1565 = vadd.f32 %v1436, %v1526
        %v1566 = vadd.f32 %v1437, %v1555
        %v1567 = vadd.f32 %v1438, %v1529
        %v1568 = vadd.f32 %v1439, %v1558
        %v1569 = vadd.f32 %v1440, %v1532
        %v1570 = vadd.f32 %v1441, %v1561
        %1571 = vst [vmem:[%s293] sm:$0xff] %v1563
        %1572 = vst [vmem:[%s293 + $0x8] sm:$0xff] %v1564
        %1573 = vst [vmem:[%s293 + $0x10] sm:$0xff] %v1565
        %1574 = vst [vmem:[%s293 + $0x18] sm:$0xff] %v1566
        %1575 = vst [vmem:[%s293 + $0x20] sm:$0xff] %v1567
        %1576 = vst [vmem:[%s293 + $0x28] sm:$0xff] %v1568
        %1577 = vst [vmem:[%s293 + $0x30] sm:$0xff] %v1569
        %1578 = vst [vmem:[%s293 + $0x38] sm:$0xff] %v1570
        %s1579 = sand.u32 %s166, 1
        %s1580 = scalar_lea.sflag [#allocation4], %s1579
        %s1581 = sand.u32 %s166, 1
        %s1582 = smul.addr %s1581, 64
        %s1583 = scalar_lea.vmem [#allocation7], %s1582
        // Predicated region
        $region53: #{tpu_custom_call.1} parent=43 // pred_check
          %p1584 = pneg %p176
        $region54: #{tpu_custom_call.1} parent=43 // pred_check_branch
          %1586 = sbr.rel (%p1584) target = $region56
        $region55: #{tpu_custom_call.1} parent=43 // pred_region
          %1588 = vsyncadd %s1580, 0
          %s1589 = smul.addr %s22, 8
          %s1590 = smul.addr %s1589, 8
          %s1591 = scalar_lea.hbm %s6, %s1590
          %s1592 = sshll.u32 %s1583, 4
          %s1593 = int_to_ptr.vmem [resolvable:$true] %s1592
          %s1594 = sshll.u32 %s1591, 4
          %s1595 = int_to_ptr.hbm [resolvable:$true] %s1594
          %1600 = dma.vmem_to_hbm [thread:$0]  %s1593, 1024, %s1595, %s1580, 256, 256, 16
        $region56: #{tpu_custom_call.1} parent=43 // pred_fallthru
          _
      $region44: #{tpu_custom_call.1} parent=5 // pred_fallthru
        _
      %p1601 = scmp.le.s32.totalorder 2, %s17
      // Predicated region
      $region57: #{tpu_custom_call.1} parent=5 // pred_check
        %p1602 = pneg %p1601
      $region58: #{tpu_custom_call.1} parent=5 // pred_check_branch
        %1604 = sbr.rel (%p1602) target = $region60
      $region59: #{tpu_custom_call.1} parent=5 // pred_region
        %s1605 = ssub.s32 %s17, 2
        // Predicated region
        $region61: #{tpu_custom_call.1} parent=59 // pred_check
          %p1606 = pneg %p182
        $region62: #{tpu_custom_call.1} parent=59 // pred_check_branch
          %1608 = sbr.rel (%p1606) target = $region64
        $region63: #{tpu_custom_call.1} parent=59 // pred_region
          %s1609 = sand.u32 %s167, 1
          %s1610 = scalar_lea.sflag [#allocation4], %s1609
          %s1611 = sand.u32 %s167, 1
          %s1612 = smul.addr %s1611, 64
          %s1613 = scalar_lea.vmem [#allocation7], %s1612
          %1615 = dma.done %s1610, 1024
        $region64: #{tpu_custom_call.1} parent=59 // pred_fallthru
          _
      $region60: #{tpu_custom_call.1} parent=5 // pred_fallthru
        _
    $region6: #{tpu_custom_call.1} parent=1 // loop_footer
      %s21 = sadd.s32 1, %s17
    $region7: #{tpu_custom_call.1} parent=1 // loop_footer_branch
      %16 = sbr.rel target = $region3
    $region8: #{tpu_custom_call.1} parent=1 // loop_exit
      _
    %1616 = vsyncpa [#allocation3], 1
    %s1617 = scalar_lea.sflag [#allocation3], 1
    %1618 = vsyncpa %s1617, 1
    %1619 = vsyncpa [#allocation6], 1
    %1620 = vsyncpa [#allocation4], 1
    %s1621 = scalar_lea.sflag [#allocation4], 1
    %1622 = vsyncpa %s1621, 1

</llo_original>
